<compile_context>
chip_gen: v7x
topology: tpu7x:2x2x1
jax: 0.10.0
libtpu: 0.0.40
codegen_flags: <defaults>
</compile_context>

<pallas_src>
import jax
import jax.numpy as jnp
from jax.experimental import pallas as pl
from jax.experimental.pallas import tpu as pltpu


def _round_up(x, m):
    return ((x + m - 1) // m) * m


def _mm(a, b):
    """Plain a @ b on the MXU (weights pre-transposed to (in, out) in the wrapper)."""
    return jax.lax.dot_general(
        a, b, dimension_numbers=(((1,), (0,)), ((), ())),
        preferred_element_type=jnp.float32)


def decoder_kernel(cat_ref, enc_ref, emb_ref, h_ref,
                   tmat_ref, tmatT_ref, mask_ref,
                   wt_ref, v_ref, ac1_ref, ac2_ref, acb_ref,
                   wih0_ref, whh0_ref, bih0_ref, bhh0_ref,
                   wih1_ref, whh1_ref, bih1_ref, bhh1_ref,
                   outw_ref, outb_ref,
                   logits_ref, newh_ref):
    Bp, Ep = emb_ref.shape          # padded batch (sublane multiple), padded embedding (lane mult.)

    emb = emb_ref[...]              # (Bp, Ep)    embedded decoder token (lane-dense, padded)
    enc = enc_ref[...]              # (Bp*S, Ep)  encoder states, rows ordered (batch-major, seq-minor)

    # ---- Bahdanau additive attention: ALL S positions in ONE matmul ----
    # cat_ref = [embedded (broadcast over S) | encoder]  -> (Bp*S, 2Ep)
    t2d = jnp.tanh(_mm(cat_ref[...], wt_ref[...]))                   # (Bp*S, Ep)
    u = jnp.sum(t2d * v_ref[...], axis=-1, keepdims=True)           # (Bp*S, 1) raw score per (b, s)

    # Gather the raw scores into a lane-dense (Bp, S) tile on the MXU:
    #   (mask @ (tmatT * u))[b, s] = sum_c [c//S==b] * [c%S==s] * u[c] = u[b*S + s]
    scores = _mm(mask_ref[...], tmatT_ref[...] * u)                  # (Bp, S)

    # numerically-stable softmax over the S positions: one lane-axis max / exp / sum
    m = jnp.max(scores, axis=-1, keepdims=True)
    ex = jnp.exp(scores - m)
    denom = jnp.sum(ex, axis=-1, keepdims=True)
    attn = ex * pl.reciprocal(denom, approx=True)                    # (Bp, S)

    # context vector as ONE contraction:
    #   scatter attn back to a block-diagonal (Bp, Bp*S) matrix, then contract with enc.
    #   (attn @ tmat)[b, c] = attn[b, c % S];  mask[b, c] = [c // S == b]
    a_mat = _mm(attn, tmat_ref[...]) * mask_ref[...]                 # (Bp, Bp*S)
    context = _mm(a_mat, enc)                                        # (Bp, Ep)

    # ---- attn_combine: Linear(2E -> E) over cat(embedded, context) ----
    gru_in = _mm(emb, ac1_ref[...]) + _mm(context, ac2_ref[...]) + acb_ref[...]

    # ---- 2-layer GRU, single step; gates fused (one (Bp, 3Ep) matmul per operand) ----
    def gru_cell(x, h, wih_ref, whh_ref, bih_ref, bhh_ref):
        gi = _mm(x, wih_ref[...]) + bih_ref[...]                     # (Bp, 3Ep)  [r | z | n]
        gh = _mm(h, whh_ref[...]) + bhh_ref[...]                     # (Bp, 3Ep)
        r = jax.nn.sigmoid(gi[:, :Ep] + gh[:, :Ep])
        z = jax.nn.sigmoid(gi[:, Ep:2 * Ep] + gh[:, Ep:2 * Ep])
        n = jnp.tanh(gi[:, 2 * Ep:] + r * gh[:, 2 * Ep:])
        return (1.0 - z) * n + z * h

    h0_new = gru_cell(gru_in, h_ref[0:Bp, :], wih0_ref, whh0_ref, bih0_ref, bhh0_ref)
    h1_new = gru_cell(h0_new, h_ref[Bp:2 * Bp, :], wih1_ref, whh1_ref, bih1_ref, bhh1_ref)

    # single contiguous lane-dense store of the new hidden state
    newh_ref[...] = jnp.concatenate([h0_new, h1_new], axis=0)        # (2*Bp, Ep)

    # ---- output projection: lane-dense (Bp, Vp) store ----
    logits_ref[...] = _mm(h1_new, outw_ref[...]) + outb_ref[...]


# ---------------------------- wrapper-side layout plumbing ----------------------------

def _pad2(x, rows, cols):
    return jnp.pad(x, ((0, rows - x.shape[0]), (0, cols - x.shape[1])))


def _pad_gate_w_t(w, Ep):
    """PyTorch GRU weight (3E, E) -> transposed and per-gate zero-padded (Ep, 3*Ep)."""
    E = w.shape[1]
    wt = w.T                                                         # (E, 3E), gate blocks on columns
    blocks = [_pad2(wt[:, g * E:(g + 1) * E], Ep, Ep) for g in range(3)]
    return jnp.concatenate(blocks, axis=1)                           # (Ep, 3Ep)


def _pad_gate_b(b, Ep):
    E = b.shape[0] // 3
    blocks = [jnp.pad(b[g * E:(g + 1) * E], (0, Ep - E)) for g in range(3)]
    return jnp.concatenate(blocks)[None, :]                          # (1, 3Ep)


@jax.jit
def attention_decoder_bahdanau(params, input_tensor, hidden_tensor, encoder_output):
    # TODO(synk): embedding lookup (data-dependent gather) stays in JAX glue.
    emb = params['embedding'][input_tensor][0]                       # (B, E)

    S, B, E = encoder_output.shape
    L = hidden_tensor.shape[0]                                       # must be 2 (module constraint)
    Voc = params['out_w'].shape[0]

    # ---- pad to TPU-native tiles: B -> 8 sublanes, E / Voc -> 128 lanes ----
    Bp = _round_up(max(B, 8), 8)
    Ep = _round_up(max(E, 128), 128)
    Vp = _round_up(max(Voc, 128), 128)

    emb_p = _pad2(emb, Bp, Ep)                                       # (Bp, Ep)
    enc_bse = jnp.transpose(encoder_output, (1, 0, 2))               # (B, S, E)
    enc_p = jnp.pad(enc_bse, ((0, Bp - B), (0, 0), (0, Ep - E)))     # (Bp, S, Ep)
    enc2d = enc_p.reshape(Bp * S, Ep)                                # rows = (b, s), b-major
    emb_rep = jnp.broadcast_to(emb_p[:, None, :], (Bp, S, Ep))
    cat2d = jnp.concatenate([emb_rep, enc_p], axis=-1).reshape(Bp * S, 2 * Ep)
    h2d = jnp.pad(hidden_tensor, ((0, 0), (0, Bp - B), (0, Ep - E))).reshape(L * Bp, Ep)

    # tiny constant matrices for the MXU scatter/gather of attention weights
    c = jnp.arange(Bp * S)
    tmat = (c[None, :] % S == jnp.arange(S)[:, None]).astype(jnp.float32)    # (S, Bp*S)
    tmatT = tmat.T                                                           # (Bp*S, S)
    mask = (c[None, :] // S == jnp.arange(Bp)[:, None]).astype(jnp.float32)  # (Bp, Bp*S)

    # ---- weights: pre-transposed to (in, out) and block-padded (no NT matmuls in-kernel) ----
    W = params['W_w']                                                # (E, 2E): [expanded | encoder]
    wt = jnp.concatenate([_pad2(W[:, :E].T, Ep, Ep),
                          _pad2(W[:, E:].T, Ep, Ep)], axis=0)        # (2Ep, Ep)
    v_row = jnp.pad(params['V'], (0, Ep - E))[None, :]               # (1, Ep)
    acW = params['attn_combine_w']                                   # (E, 2E): [embedded | context]
    ac1 = _pad2(acW[:, :E].T, Ep, Ep)
    ac2 = _pad2(acW[:, E:].T, Ep, Ep)
    acb = jnp.pad(params['attn_combine_b'], (0, Ep - E))[None, :]
    outw = _pad2(params['out_w'].T, Ep, Vp)                          # (Ep, Vp)
    outb = jnp.pad(params['out_b'], (0, Vp - Voc))[None, :]          # (1, Vp)

    wih0 = _pad_gate_w_t(params['w_ih_l0'], Ep)
    whh0 = _pad_gate_w_t(params['w_hh_l0'], Ep)
    bih0 = _pad_gate_b(params['b_ih_l0'], Ep)
    bhh0 = _pad_gate_b(params['b_hh_l0'], Ep)
    wih1 = _pad_gate_w_t(params['w_ih_l1'], Ep)
    whh1 = _pad_gate_w_t(params['w_hh_l1'], Ep)
    bih1 = _pad_gate_b(params['b_ih_l1'], Ep)
    bhh1 = _pad_gate_b(params['b_hh_l1'], Ep)

    vmem = pl.BlockSpec(memory_space=pltpu.MemorySpace.VMEM)
    logits_p, newh_p = pl.pallas_call(
        decoder_kernel,
        out_shape=(jax.ShapeDtypeStruct((Bp, Vp), jnp.float32),
                   jax.ShapeDtypeStruct((L * Bp, Ep), jnp.float32)),
        in_specs=[vmem] * 22,
        out_specs=(vmem, vmem),
    )(cat2d, enc2d, emb_p, h2d, tmat, tmatT, mask,
      wt, v_row, ac1, ac2, acb,
      wih0, whh0, bih0, bhh0,
      wih1, whh1, bih1, bhh1,
      outw, outb)

    logits = logits_p[:B, :Voc]
    new_h = newh_p.reshape(L, Bp, Ep)[:, :B, :E]
    return logits, new_h


# ---------------------------- pure-JAX reference & test harness ----------------------------

def reference_forward(params, input_tensor, hidden_tensor, encoder_output):
    """Pure-JAX mirror of the PyTorch forward (for verification)."""
    E = params['V'].shape[0]
    L = hidden_tensor.shape[0]
    S, B, _ = encoder_output.shape

    embedded = params['embedding'][input_tensor]                     # (1, B, E)
    expanded = jnp.broadcast_to(embedded, (S, B, E))
    catd = jnp.concatenate([expanded, encoder_output], axis=-1)      # (S, B, 2E)
    tanh_scores = jnp.tanh(catd @ params['W_w'].T)                   # (S, B, E)
    Vm = jnp.broadcast_to(params['V'][None, None, :], (B, 1, E))     # (B, 1, E)
    ts_bes = jnp.transpose(tanh_scores, (1, 2, 0))                   # (B, E, S)
    attn_scores = jnp.matmul(Vm, ts_bes)                             # (B, 1, S)
    attn_weights = jax.nn.softmax(attn_scores, axis=-1)
    enc_bse = jnp.transpose(encoder_output, (1, 0, 2))               # (B, S, E)
    context = jnp.matmul(attn_weights, enc_bse)                      # (B, 1, E)
    combined = jnp.concatenate([embedded, jnp.transpose(context, (1, 0, 2))], axis=-1)
    x = (combined @ params['attn_combine_w'].T + params['attn_combine_b'])[0]  # (B, E)

    hs = []
    for l in range(L):
        h = hidden_tensor[l]
        gi = x @ params[f'w_ih_l{l}'].T + params[f'b_ih_l{l}']
        gh = h @ params[f'w_hh_l{l}'].T + params[f'b_hh_l{l}']
        r = jax.nn.sigmoid(gi[:, :E] + gh[:, :E])
        z = jax.nn.sigmoid(gi[:, E:2 * E] + gh[:, E:2 * E])
        n = jnp.tanh(gi[:, 2 * E:] + r * gh[:, 2 * E:])
        h_new = (1.0 - z) * n + z * h
        hs.append(h_new)
        x = h_new
    new_hidden = jnp.stack(hs, axis=0)
    logits = x @ params['out_w'].T + params['out_b']                 # (B, Voc)
    return logits, new_hidden


def init_params(key, E, Voc, L=2):
    ks = jax.random.split(key, 20)

    def lin_w(k, out_f, in_f):
        b = 1.0 / jnp.sqrt(in_f)
        return jax.random.uniform(k, (out_f, in_f), jnp.float32, -b, b)

    def lin_b(k, out_f, in_f):
        b = 1.0 / jnp.sqrt(in_f)
        return jax.random.uniform(k, (out_f,), jnp.float32, -b, b)

    gb = 1.0 / jnp.sqrt(E)
    p = {
        'embedding': jax.random.normal(ks[0], (Voc, E), jnp.float32),
        'W_w': lin_w(ks[1], E, L * E),                               # W: Linear(L*E -> E, no bias)
        'V': jax.random.uniform(ks[2], (E,), jnp.float32, 0.0, 1.0),
        'attn_combine_w': lin_w(ks[3], E, L * E),
        'attn_combine_b': lin_b(ks[4], E, L * E),
        'out_w': lin_w(ks[5], Voc, E),
        'out_b': lin_b(ks[6], Voc, E),
    }
    for l in range(L):
        p[f'w_ih_l{l}'] = jax.random.uniform(ks[7 + 4 * l], (3 * E, E), jnp.float32, -gb, gb)
        p[f'w_hh_l{l}'] = jax.random.uniform(ks[8 + 4 * l], (3 * E, E), jnp.float32, -gb, gb)
        p[f'b_ih_l{l}'] = jax.random.uniform(ks[9 + 4 * l], (3 * E,), jnp.float32, -gb, gb)
        p[f'b_hh_l{l}'] = jax.random.uniform(ks[10 + 4 * l], (3 * E,), jnp.float32, -gb, gb)
    return p


if __name__ == "__main__":
    B, E, S, Voc, L = 2, 32, 8, 16, 2   # num_layers must be 2 for the module to be shape-consistent
    key = jax.random.PRNGKey(0)
    kp, ki, kh, ke = jax.random.split(key, 4)

    params = init_params(kp, E, Voc, L)
    input_tensor = jax.random.randint(ki, (1, B), 0, Voc)                  # (1, B) token ids
    hidden_tensor = jax.random.normal(kh, (L, B, E), jnp.float32)          # (L, B, E)
    encoder_output = jax.random.normal(ke, (S, B, E), jnp.float32)         # (S, B, E)

    logits, new_h = attention_decoder_bahdanau(params, input_tensor, hidden_tensor, encoder_output)
    jax.block_until_ready((logits, new_h))

    ref_logits, ref_h = reference_forward(params, input_tensor, hidden_tensor, encoder_output)
    assert logits.shape == (B, Voc) and new_h.shape == (L, B, E)
    assert jnp.allclose(logits, ref_logits, atol=2e-3, rtol=2e-3)
    assert jnp.allclose(new_h, ref_h, atol=2e-3, rtol=2e-3)
    print("KERNEL_OK")
</pallas_src>

<mosaic_0001>
module attributes {stable_mosaic.version = 11 : i64} {
  func.func @decoder_kernel(%arg0: memref<64x256xf32, #tpu.memory_space<vmem>>, %arg1: memref<64x128xf32, #tpu.memory_space<vmem>>, %arg2: memref<8x128xf32, #tpu.memory_space<vmem>>, %arg3: memref<16x128xf32, #tpu.memory_space<vmem>>, %arg4: memref<8x64xf32, #tpu.memory_space<vmem>>, %arg5: memref<64x8xf32, #tpu.memory_space<vmem>>, %arg6: memref<8x64xf32, #tpu.memory_space<vmem>>, %arg7: memref<256x128xf32, #tpu.memory_space<vmem>>, %arg8: memref<1x128xf32, #tpu.memory_space<vmem>>, %arg9: memref<128x128xf32, #tpu.memory_space<vmem>>, %arg10: memref<128x128xf32, #tpu.memory_space<vmem>>, %arg11: memref<1x128xf32, #tpu.memory_space<vmem>>, %arg12: memref<128x384xf32, #tpu.memory_space<vmem>>, %arg13: memref<128x384xf32, #tpu.memory_space<vmem>>, %arg14: memref<1x384xf32, #tpu.memory_space<vmem>>, %arg15: memref<1x384xf32, #tpu.memory_space<vmem>>, %arg16: memref<128x384xf32, #tpu.memory_space<vmem>>, %arg17: memref<128x384xf32, #tpu.memory_space<vmem>>, %arg18: memref<1x384xf32, #tpu.memory_space<vmem>>, %arg19: memref<1x384xf32, #tpu.memory_space<vmem>>, %arg20: memref<128x128xf32, #tpu.memory_space<vmem>>, %arg21: memref<1x128xf32, #tpu.memory_space<vmem>>, %arg22: memref<8x128xf32, #tpu.memory_space<vmem>>, %arg23: memref<16x128xf32, #tpu.memory_space<vmem>>) attributes {dimension_semantics = [], scalar_prefetch = 0 : i64, scratch_operands = 0 : i64, tpu.core_type = #tpu.core_type<tc>} {
    %c0 = arith.constant 0 : index
    %c0_0 = arith.constant 0 : index
    %0 = vector.load %arg2[%c0, %c0_0] : memref<8x128xf32, #tpu.memory_space<vmem>>, vector<8x128xf32>
    %c0_1 = arith.constant 0 : index
    %c0_2 = arith.constant 0 : index
    %1 = vector.load %arg1[%c0_1, %c0_2] : memref<64x128xf32, #tpu.memory_space<vmem>>, vector<64x128xf32>
    %c0_3 = arith.constant 0 : index
    %c0_4 = arith.constant 0 : index
    %2 = vector.load %arg0[%c0_3, %c0_4] : memref<64x256xf32, #tpu.memory_space<vmem>>, vector<64x256xf32>
    %c0_5 = arith.constant 0 : index
    %c0_6 = arith.constant 0 : index
    %3 = vector.load %arg7[%c0_5, %c0_6] : memref<256x128xf32, #tpu.memory_space<vmem>>, vector<256x128xf32>
    %cst = arith.constant dense<0.000000e+00> : vector<64x128xf32>
    %4 = tpu.matmul %2, %3, %cst {dimension_numbers = #tpu.dot_dimension_numbers<[1], [0], [0], [1], [0, 0, 1, 1], [], []>} : vector<64x256xf32>, vector<256x128xf32>, vector<64x128xf32> -> vector<64x128xf32>
    %5 = math.tanh %4 : vector<64x128xf32>
    %c0_7 = arith.constant 0 : index
    %c0_8 = arith.constant 0 : index
    %6 = vector.load %arg8[%c0_7, %c0_8] : memref<1x128xf32, #tpu.memory_space<vmem>>, vector<1x128xf32>
    %7 = vector.broadcast %6 : vector<1x128xf32> to vector<64x128xf32>
    %8 = arith.mulf %5, %7 : vector<64x128xf32>
    %cst_9 = arith.constant dense<0.000000e+00> : vector<64xf32>
    %9 = vector.multi_reduction <add>, %8, %cst_9 [1] : vector<64x128xf32> to vector<64xf32>
    %10 = vector.shape_cast %9 : vector<64xf32> to vector<64x1xf32>
    %c0_10 = arith.constant 0 : index
    %c0_11 = arith.constant 0 : index
    %11 = vector.load %arg6[%c0_10, %c0_11] : memref<8x64xf32, #tpu.memory_space<vmem>>, vector<8x64xf32>
    %c0_12 = arith.constant 0 : index
    %c0_13 = arith.constant 0 : index
    %12 = vector.load %arg5[%c0_12, %c0_13] : memref<64x8xf32, #tpu.memory_space<vmem>>, vector<64x8xf32>
    %13 = vector.broadcast %10 : vector<64x1xf32> to vector<64x8xf32>
    %14 = arith.mulf %12, %13 : vector<64x8xf32>
    %cst_14 = arith.constant dense<0.000000e+00> : vector<8x8xf32>
    %15 = tpu.matmul %11, %14, %cst_14 {dimension_numbers = #tpu.dot_dimension_numbers<[1], [0], [0], [1], [0, 0, 1, 1], [], []>} : vector<8x64xf32>, vector<64x8xf32>, vector<8x8xf32> -> vector<8x8xf32>
    %cst_15 = arith.constant dense<0xFF800000> : vector<8xf32>
    %16 = vector.multi_reduction <maximumf>, %15, %cst_15 [1] : vector<8x8xf32> to vector<8xf32>
    %17 = vector.shape_cast %16 : vector<8xf32> to vector<8x1xf32>
    %18 = vector.broadcast %17 : vector<8x1xf32> to vector<8x8xf32>
    %19 = arith.subf %15, %18 : vector<8x8xf32>
    %20 = math.exp %19 : vector<8x8xf32>
    %cst_16 = arith.constant dense<0.000000e+00> : vector<8xf32>
    %21 = vector.multi_reduction <add>, %20, %cst_16 [1] : vector<8x8xf32> to vector<8xf32>
    %22 = vector.shape_cast %21 : vector<8xf32> to vector<8x1xf32>
    %23 = tpu.reciprocal %22 {approx = true} : vector<8x1xf32> -> vector<8x1xf32>
    %24 = vector.broadcast %23 : vector<8x1xf32> to vector<8x8xf32>
    %25 = arith.mulf %20, %24 : vector<8x8xf32>
    %c0_17 = arith.constant 0 : index
    %c0_18 = arith.constant 0 : index
    %26 = vector.load %arg4[%c0_17, %c0_18] : memref<8x64xf32, #tpu.memory_space<vmem>>, vector<8x64xf32>
    %cst_19 = arith.constant dense<0.000000e+00> : vector<8x64xf32>
    %27 = tpu.matmul %25, %26, %cst_19 {dimension_numbers = #tpu.dot_dimension_numbers<[1], [0], [0], [1], [0, 0, 1, 1], [], []>} : vector<8x8xf32>, vector<8x64xf32>, vector<8x64xf32> -> vector<8x64xf32>
    %c0_20 = arith.constant 0 : index
    %c0_21 = arith.constant 0 : index
    %28 = vector.load %arg6[%c0_20, %c0_21] : memref<8x64xf32, #tpu.memory_space<vmem>>, vector<8x64xf32>
    %29 = arith.mulf %27, %28 : vector<8x64xf32>
    %cst_22 = arith.constant dense<0.000000e+00> : vector<8x128xf32>
    %30 = tpu.matmul %29, %1, %cst_22 {dimension_numbers = #tpu.dot_dimension_numbers<[1], [0], [0], [1], [0, 0, 1, 1], [], []>} : vector<8x64xf32>, vector<64x128xf32>, vector<8x128xf32> -> vector<8x128xf32>
    %c0_23 = arith.constant 0 : index
    %c0_24 = arith.constant 0 : index
    %31 = vector.load %arg9[%c0_23, %c0_24] : memref<128x128xf32, #tpu.memory_space<vmem>>, vector<128x128xf32>
    %cst_25 = arith.constant dense<0.000000e+00> : vector<8x128xf32>
    %32 = tpu.matmul %0, %31, %cst_25 {dimension_numbers = #tpu.dot_dimension_numbers<[1], [0], [0], [1], [0, 0, 1, 1], [], []>} : vector<8x128xf32>, vector<128x128xf32>, vector<8x128xf32> -> vector<8x128xf32>
    %c0_26 = arith.constant 0 : index
    %c0_27 = arith.constant 0 : index
    %33 = vector.load %arg10[%c0_26, %c0_27] : memref<128x128xf32, #tpu.memory_space<vmem>>, vector<128x128xf32>
    %cst_28 = arith.constant dense<0.000000e+00> : vector<8x128xf32>
    %34 = tpu.matmul %30, %33, %cst_28 {dimension_numbers = #tpu.dot_dimension_numbers<[1], [0], [0], [1], [0, 0, 1, 1], [], []>} : vector<8x128xf32>, vector<128x128xf32>, vector<8x128xf32> -> vector<8x128xf32>
    %35 = arith.addf %32, %34 : vector<8x128xf32>
    %c0_29 = arith.constant 0 : index
    %c0_30 = arith.constant 0 : index
    %36 = vector.load %arg11[%c0_29, %c0_30] : memref<1x128xf32, #tpu.memory_space<vmem>>, vector<1x128xf32>
    %37 = vector.broadcast %36 : vector<1x128xf32> to vector<8x128xf32>
    %38 = arith.addf %35, %37 : vector<8x128xf32>
    %c0_31 = arith.constant 0 : index
    %c0_32 = arith.constant 0 : index
    %39 = vector.load %arg3[%c0_31, %c0_32] : memref<16x128xf32, #tpu.memory_space<vmem>>, vector<8x128xf32>
    %c0_33 = arith.constant 0 : index
    %c0_34 = arith.constant 0 : index
    %40 = vector.load %arg12[%c0_33, %c0_34] : memref<128x384xf32, #tpu.memory_space<vmem>>, vector<128x384xf32>
    %cst_35 = arith.constant dense<0.000000e+00> : vector<8x384xf32>
    %41 = tpu.matmul %38, %40, %cst_35 {dimension_numbers = #tpu.dot_dimension_numbers<[1], [0], [0], [1], [0, 0, 1, 1], [], []>} : vector<8x128xf32>, vector<128x384xf32>, vector<8x384xf32> -> vector<8x384xf32>
    %c0_36 = arith.constant 0 : index
    %c0_37 = arith.constant 0 : index
    %42 = vector.load %arg14[%c0_36, %c0_37] : memref<1x384xf32, #tpu.memory_space<vmem>>, vector<1x384xf32>
    %43 = vector.broadcast %42 : vector<1x384xf32> to vector<8x384xf32>
    %44 = arith.addf %41, %43 : vector<8x384xf32>
    %c0_38 = arith.constant 0 : index
    %c0_39 = arith.constant 0 : index
    %45 = vector.load %arg13[%c0_38, %c0_39] : memref<128x384xf32, #tpu.memory_space<vmem>>, vector<128x384xf32>
    %cst_40 = arith.constant dense<0.000000e+00> : vector<8x384xf32>
    %46 = tpu.matmul %39, %45, %cst_40 {dimension_numbers = #tpu.dot_dimension_numbers<[1], [0], [0], [1], [0, 0, 1, 1], [], []>} : vector<8x128xf32>, vector<128x384xf32>, vector<8x384xf32> -> vector<8x384xf32>
    %c0_41 = arith.constant 0 : index
    %c0_42 = arith.constant 0 : index
    %47 = vector.load %arg15[%c0_41, %c0_42] : memref<1x384xf32, #tpu.memory_space<vmem>>, vector<1x384xf32>
    %48 = vector.broadcast %47 : vector<1x384xf32> to vector<8x384xf32>
    %49 = arith.addf %46, %48 : vector<8x384xf32>
    %50 = vector.extract_strided_slice %44 {offsets = [0, 0], sizes = [8, 128], strides = [1, 1]} : vector<8x384xf32> to vector<8x128xf32>
    %51 = vector.extract_strided_slice %49 {offsets = [0, 0], sizes = [8, 128], strides = [1, 1]} : vector<8x384xf32> to vector<8x128xf32>
    %52 = arith.addf %50, %51 : vector<8x128xf32>
    %53 = arith.negf %52 : vector<8x128xf32>
    %54 = math.exp %53 : vector<8x128xf32>
    %cst_43 = arith.constant 1.000000e+00 : f32
    %55 = vector.broadcast %cst_43 : f32 to vector<8x128xf32>
    %56 = arith.addf %55, %54 : vector<8x128xf32>
    %57 = arith.divf %55, %56 : vector<8x128xf32>
    %58 = vector.extract_strided_slice %44 {offsets = [0, 128], sizes = [8, 128], strides = [1, 1]} : vector<8x384xf32> to vector<8x128xf32>
    %59 = vector.extract_strided_slice %49 {offsets = [0, 128], sizes = [8, 128], strides = [1, 1]} : vector<8x384xf32> to vector<8x128xf32>
    %60 = arith.addf %58, %59 : vector<8x128xf32>
    %61 = arith.negf %60 : vector<8x128xf32>
    %62 = math.exp %61 : vector<8x128xf32>
    %cst_44 = arith.constant 1.000000e+00 : f32
    %63 = vector.broadcast %cst_44 : f32 to vector<8x128xf32>
    %64 = arith.addf %63, %62 : vector<8x128xf32>
    %65 = arith.divf %63, %64 : vector<8x128xf32>
    %66 = vector.extract_strided_slice %44 {offsets = [0, 256], sizes = [8, 128], strides = [1, 1]} : vector<8x384xf32> to vector<8x128xf32>
    %67 = vector.extract_strided_slice %49 {offsets = [0, 256], sizes = [8, 128], strides = [1, 1]} : vector<8x384xf32> to vector<8x128xf32>
    %68 = arith.mulf %57, %67 : vector<8x128xf32>
    %69 = arith.addf %66, %68 : vector<8x128xf32>
    %70 = math.tanh %69 : vector<8x128xf32>
    %cst_45 = arith.constant 1.000000e+00 : f32
    %71 = vector.broadcast %cst_45 : f32 to vector<8x128xf32>
    %72 = arith.subf %71, %65 : vector<8x128xf32>
    %73 = arith.mulf %72, %70 : vector<8x128xf32>
    %74 = arith.mulf %65, %39 : vector<8x128xf32>
    %75 = arith.addf %73, %74 : vector<8x128xf32>
    %c8 = arith.constant 8 : index
    %c0_46 = arith.constant 0 : index
    %76 = vector.load %arg3[%c8, %c0_46] : memref<16x128xf32, #tpu.memory_space<vmem>>, vector<8x128xf32>
    %c0_47 = arith.constant 0 : index
    %c0_48 = arith.constant 0 : index
    %77 = vector.load %arg16[%c0_47, %c0_48] : memref<128x384xf32, #tpu.memory_space<vmem>>, vector<128x384xf32>
    %cst_49 = arith.constant dense<0.000000e+00> : vector<8x384xf32>
    %78 = tpu.matmul %75, %77, %cst_49 {dimension_numbers = #tpu.dot_dimension_numbers<[1], [0], [0], [1], [0, 0, 1, 1], [], []>} : vector<8x128xf32>, vector<128x384xf32>, vector<8x384xf32> -> vector<8x384xf32>
    %c0_50 = arith.constant 0 : index
    %c0_51 = arith.constant 0 : index
    %79 = vector.load %arg18[%c0_50, %c0_51] : memref<1x384xf32, #tpu.memory_space<vmem>>, vector<1x384xf32>
    %80 = vector.broadcast %79 : vector<1x384xf32> to vector<8x384xf32>
    %81 = arith.addf %78, %80 : vector<8x384xf32>
    %c0_52 = arith.constant 0 : index
    %c0_53 = arith.constant 0 : index
    %82 = vector.load %arg17[%c0_52, %c0_53] : memref<128x384xf32, #tpu.memory_space<vmem>>, vector<128x384xf32>
    %cst_54 = arith.constant dense<0.000000e+00> : vector<8x384xf32>
    %83 = tpu.matmul %76, %82, %cst_54 {dimension_numbers = #tpu.dot_dimension_numbers<[1], [0], [0], [1], [0, 0, 1, 1], [], []>} : vector<8x128xf32>, vector<128x384xf32>, vector<8x384xf32> -> vector<8x384xf32>
    %c0_55 = arith.constant 0 : index
    %c0_56 = arith.constant 0 : index
    %84 = vector.load %arg19[%c0_55, %c0_56] : memref<1x384xf32, #tpu.memory_space<vmem>>, vector<1x384xf32>
    %85 = vector.broadcast %84 : vector<1x384xf32> to vector<8x384xf32>
    %86 = arith.addf %83, %85 : vector<8x384xf32>
    %87 = vector.extract_strided_slice %81 {offsets = [0, 0], sizes = [8, 128], strides = [1, 1]} : vector<8x384xf32> to vector<8x128xf32>
    %88 = vector.extract_strided_slice %86 {offsets = [0, 0], sizes = [8, 128], strides = [1, 1]} : vector<8x384xf32> to vector<8x128xf32>
    %89 = arith.addf %87, %88 : vector<8x128xf32>
    %90 = arith.negf %89 : vector<8x128xf32>
    %91 = math.exp %90 : vector<8x128xf32>
    %cst_57 = arith.constant 1.000000e+00 : f32
    %92 = vector.broadcast %cst_57 : f32 to vector<8x128xf32>
    %93 = arith.addf %92, %91 : vector<8x128xf32>
    %94 = arith.divf %92, %93 : vector<8x128xf32>
    %95 = vector.extract_strided_slice %81 {offsets = [0, 128], sizes = [8, 128], strides = [1, 1]} : vector<8x384xf32> to vector<8x128xf32>
    %96 = vector.extract_strided_slice %86 {offsets = [0, 128], sizes = [8, 128], strides = [1, 1]} : vector<8x384xf32> to vector<8x128xf32>
    %97 = arith.addf %95, %96 : vector<8x128xf32>
    %98 = arith.negf %97 : vector<8x128xf32>
    %99 = math.exp %98 : vector<8x128xf32>
    %cst_58 = arith.constant 1.000000e+00 : f32
    %100 = vector.broadcast %cst_58 : f32 to vector<8x128xf32>
    %101 = arith.addf %100, %99 : vector<8x128xf32>
    %102 = arith.divf %100, %101 : vector<8x128xf32>
    %103 = vector.extract_strided_slice %81 {offsets = [0, 256], sizes = [8, 128], strides = [1, 1]} : vector<8x384xf32> to vector<8x128xf32>
    %104 = vector.extract_strided_slice %86 {offsets = [0, 256], sizes = [8, 128], strides = [1, 1]} : vector<8x384xf32> to vector<8x128xf32>
    %105 = arith.mulf %94, %104 : vector<8x128xf32>
    %106 = arith.addf %103, %105 : vector<8x128xf32>
    %107 = math.tanh %106 : vector<8x128xf32>
    %cst_59 = arith.constant 1.000000e+00 : f32
    %108 = vector.broadcast %cst_59 : f32 to vector<8x128xf32>
    %109 = arith.subf %108, %102 : vector<8x128xf32>
    %110 = arith.mulf %109, %107 : vector<8x128xf32>
    %111 = arith.mulf %102, %76 : vector<8x128xf32>
    %112 = arith.addf %110, %111 : vector<8x128xf32>
    %113 = tpu.concatenate %75, %112 in 0 : vector<8x128xf32>, vector<8x128xf32> -> vector<16x128xf32>
    %c0_60 = arith.constant 0 : index
    %c0_61 = arith.constant 0 : index
    %114 = vector.load %arg23[%c0_60, %c0_61] : memref<16x128xf32, #tpu.memory_space<vmem>>, vector<16x128xf32>
    tpu.vector_store %arg23[%c0_60, %c0_61], %113 {strides = array<i32>} : memref<16x128xf32, #tpu.memory_space<vmem>>, vector<16x128xf32>,
    %c0_62 = arith.constant 0 : index
    %c0_63 = arith.constant 0 : index
    %115 = vector.load %arg20[%c0_62, %c0_63] : memref<128x128xf32, #tpu.memory_space<vmem>>, vector<128x128xf32>
    %cst_64 = arith.constant dense<0.000000e+00> : vector<8x128xf32>
    %116 = tpu.matmul %112, %115, %cst_64 {dimension_numbers = #tpu.dot_dimension_numbers<[1], [0], [0], [1], [0, 0, 1, 1], [], []>} : vector<8x128xf32>, vector<128x128xf32>, vector<8x128xf32> -> vector<8x128xf32>
    %c0_65 = arith.constant 0 : index
    %c0_66 = arith.constant 0 : index
    %117 = vector.load %arg21[%c0_65, %c0_66] : memref<1x128xf32, #tpu.memory_space<vmem>>, vector<1x128xf32>
    %118 = vector.broadcast %117 : vector<1x128xf32> to vector<8x128xf32>
    %119 = arith.addf %116, %118 : vector<8x128xf32>
    %c0_67 = arith.constant 0 : index
    %c0_68 = arith.constant 0 : index
    %120 = vector.load %arg22[%c0_67, %c0_68] : memref<8x128xf32, #tpu.memory_space<vmem>>, vector<8x128xf32>
    tpu.vector_store %arg22[%c0_67, %c0_68], %119 {strides = array<i32>} : memref<8x128xf32, #tpu.memory_space<vmem>>, vector<8x128xf32>,
    return
  }
}

</mosaic_0001>

<llo_original>
// kernel: attention_decoder_bahdanau.1
$region0: #{attention_decoder_bahdanau.1}
  #allocation0 [shape = 'u32[]', space=smem, size = 0x4, offset = 0x4, fixed_abs, tag = 'smem constant byte address 0x4 - core index']
  #allocation1 [shape = 'u32[144,128]{1,0:T(1,128)}', space=vmem, size = 0x12000, scoped, tag = 'internal scratch']
  %s0 = inlined_call_operand.vmem [shape: f32[64,256], index: 0, kind: input, shape index: {}]
  %s1 = inlined_call_operand.vmem [shape: f32[64,128], index: 1, kind: input, shape index: {}]
  %s2 = inlined_call_operand.vmem [shape: f32[8,128], index: 2, kind: input, shape index: {}]
  %s3 = inlined_call_operand.vmem [shape: f32[16,128], index: 3, kind: input, shape index: {}]
  %s4 = inlined_call_operand.vmem [shape: f32[8,64], index: 4, kind: input, shape index: {}]
  %s5 = inlined_call_operand.vmem [shape: f32[64,8], index: 5, kind: input, shape index: {}]
  %s6 = inlined_call_operand.vmem [shape: f32[8,64], index: 6, kind: input, shape index: {}]
  %s7 = inlined_call_operand.vmem [shape: f32[256,128], index: 7, kind: input, shape index: {}]
  %s8 = inlined_call_operand.vmem [shape: f32[1,128], index: 8, kind: input, shape index: {}]
  %s9 = inlined_call_operand.vmem [shape: f32[128,128], index: 9, kind: input, shape index: {}]
  %s10 = inlined_call_operand.vmem [shape: f32[128,128], index: 10, kind: input, shape index: {}]
  %s11 = inlined_call_operand.vmem [shape: f32[1,128], index: 11, kind: input, shape index: {}]
  %s12 = inlined_call_operand.vmem [shape: f32[128,384], index: 12, kind: input, shape index: {}]
  %s13 = inlined_call_operand.vmem [shape: f32[128,384], index: 13, kind: input, shape index: {}]
  %s14 = inlined_call_operand.vmem [shape: f32[1,384], index: 14, kind: input, shape index: {}]
  %s15 = inlined_call_operand.vmem [shape: f32[1,384], index: 15, kind: input, shape index: {}]
  %s16 = inlined_call_operand.vmem [shape: f32[128,384], index: 16, kind: input, shape index: {}]
  %s17 = inlined_call_operand.vmem [shape: f32[128,384], index: 17, kind: input, shape index: {}]
  %s18 = inlined_call_operand.vmem [shape: f32[1,384], index: 18, kind: input, shape index: {}]
  %s19 = inlined_call_operand.vmem [shape: f32[1,384], index: 19, kind: input, shape index: {}]
  %s20 = inlined_call_operand.vmem [shape: f32[128,128], index: 20, kind: input, shape index: {}]
  %s21 = inlined_call_operand.vmem [shape: f32[1,128], index: 21, kind: input, shape index: {}]
  %s22 = inlined_call_operand.vmem [shape: f32[8,128], index: 22, kind: output, shape index: {0}]
  %s23 = inlined_call_operand.vmem [shape: f32[16,128], index: 23, kind: output, shape index: {1}]
  %24 = xla_tuple %s22, %s23
  %s25 = sld [smem:[#allocation0]]
  $region106: #{attention_decoder_bahdanau.1} parent=0
    _
  %s27 = ssub.s32 1, %s25
  %s28 = scalar_select 0, %s27, %s25
  // Predicated region
  $region2: #{attention_decoder_bahdanau.1} parent=0 // pred_check
    _
  $region3: #{attention_decoder_bahdanau.1} parent=0 // pred_check_branch
    %30 = sbr.rel (0) target = $region5
  $region4: #{attention_decoder_bahdanau.1} parent=0 // pred_region
    _
  $region5: #{attention_decoder_bahdanau.1} parent=0 // pred_fallthru
    _
  // Predicated region
  $region6: #{attention_decoder_bahdanau.1} parent=0 // pred_check
    _
  $region7: #{attention_decoder_bahdanau.1} parent=0 // pred_check_branch
    %32 = sbr.rel (0) target = $region9
  $region8: #{attention_decoder_bahdanau.1} parent=0 // pred_region
    _
  $region9: #{attention_decoder_bahdanau.1} parent=0 // pred_fallthru
    _
  // Predicated region
  $region10: #{attention_decoder_bahdanau.1} parent=0 // pred_check
    _
  $region11: #{attention_decoder_bahdanau.1} parent=0 // pred_check_branch
    %34 = sbr.rel (0) target = $region13
  $region12: #{attention_decoder_bahdanau.1} parent=0 // pred_region
    _
  $region13: #{attention_decoder_bahdanau.1} parent=0 // pred_fallthru
    _
  // Predicated region
  $region14: #{attention_decoder_bahdanau.1} parent=0 // pred_check
    _
  $region15: #{attention_decoder_bahdanau.1} parent=0 // pred_check_branch
    %36 = sbr.rel (0) target = $region17
  $region16: #{attention_decoder_bahdanau.1} parent=0 // pred_region
    _
  $region17: #{attention_decoder_bahdanau.1} parent=0 // pred_fallthru
    _
  // Predicated region
  $region18: #{attention_decoder_bahdanau.1} parent=0 // pred_check
    _
  $region19: #{attention_decoder_bahdanau.1} parent=0 // pred_check_branch
    %38 = sbr.rel (0) target = $region21
  $region20: #{attention_decoder_bahdanau.1} parent=0 // pred_region
    _
  $region21: #{attention_decoder_bahdanau.1} parent=0 // pred_fallthru
    _
  // Predicated region
  $region22: #{attention_decoder_bahdanau.1} parent=0 // pred_check
    _
  $region23: #{attention_decoder_bahdanau.1} parent=0 // pred_check_branch
    %40 = sbr.rel (0) target = $region25
  $region24: #{attention_decoder_bahdanau.1} parent=0 // pred_region
    _
  $region25: #{attention_decoder_bahdanau.1} parent=0 // pred_fallthru
    _
  // Predicated region
  $region26: #{attention_decoder_bahdanau.1} parent=0 // pred_check
    _
  $region27: #{attention_decoder_bahdanau.1} parent=0 // pred_check_branch
    %42 = sbr.rel (0) target = $region29
  $region28: #{attention_decoder_bahdanau.1} parent=0 // pred_region
    _
  $region29: #{attention_decoder_bahdanau.1} parent=0 // pred_fallthru
    _
  // Predicated region
  $region30: #{attention_decoder_bahdanau.1} parent=0 // pred_check
    _
  $region31: #{attention_decoder_bahdanau.1} parent=0 // pred_check_branch
    %44 = sbr.rel (0) target = $region33
  $region32: #{attention_decoder_bahdanau.1} parent=0 // pred_region
    _
  $region33: #{attention_decoder_bahdanau.1} parent=0 // pred_fallthru
    _
  // Predicated region
  $region34: #{attention_decoder_bahdanau.1} parent=0 // pred_check
    _
  $region35: #{attention_decoder_bahdanau.1} parent=0 // pred_check_branch
    %46 = sbr.rel (0) target = $region37
  $region36: #{attention_decoder_bahdanau.1} parent=0 // pred_region
    _
  $region37: #{attention_decoder_bahdanau.1} parent=0 // pred_fallthru
    _
  // Predicated region
  $region38: #{attention_decoder_bahdanau.1} parent=0 // pred_check
    _
  $region39: #{attention_decoder_bahdanau.1} parent=0 // pred_check_branch
    %48 = sbr.rel (0) target = $region41
  $region40: #{attention_decoder_bahdanau.1} parent=0 // pred_region
    _
  $region41: #{attention_decoder_bahdanau.1} parent=0 // pred_fallthru
    _
  // Predicated region
  $region42: #{attention_decoder_bahdanau.1} parent=0 // pred_check
    _
  $region43: #{attention_decoder_bahdanau.1} parent=0 // pred_check_branch
    %50 = sbr.rel (0) target = $region45
  $region44: #{attention_decoder_bahdanau.1} parent=0 // pred_region
    _
  $region45: #{attention_decoder_bahdanau.1} parent=0 // pred_fallthru
    _
  // Predicated region
  $region46: #{attention_decoder_bahdanau.1} parent=0 // pred_check
    _
  $region47: #{attention_decoder_bahdanau.1} parent=0 // pred_check_branch
    %52 = sbr.rel (0) target = $region49
  $region48: #{attention_decoder_bahdanau.1} parent=0 // pred_region
    _
  $region49: #{attention_decoder_bahdanau.1} parent=0 // pred_fallthru
    _
  // Predicated region
  $region50: #{attention_decoder_bahdanau.1} parent=0 // pred_check
    _
  $region51: #{attention_decoder_bahdanau.1} parent=0 // pred_check_branch
    %54 = sbr.rel (0) target = $region53
  $region52: #{attention_decoder_bahdanau.1} parent=0 // pred_region
    _
  $region53: #{attention_decoder_bahdanau.1} parent=0 // pred_fallthru
    _
  // Predicated region
  $region54: #{attention_decoder_bahdanau.1} parent=0 // pred_check
    _
  $region55: #{attention_decoder_bahdanau.1} parent=0 // pred_check_branch
    %56 = sbr.rel (0) target = $region57
  $region56: #{attention_decoder_bahdanau.1} parent=0 // pred_region
    _
  $region57: #{attention_decoder_bahdanau.1} parent=0 // pred_fallthru
    _
  // Predicated region
  $region58: #{attention_decoder_bahdanau.1} parent=0 // pred_check
    _
  $region59: #{attention_decoder_bahdanau.1} parent=0 // pred_check_branch
    %58 = sbr.rel (0) target = $region61
  $region60: #{attention_decoder_bahdanau.1} parent=0 // pred_region
    _
  $region61: #{attention_decoder_bahdanau.1} parent=0 // pred_fallthru
    _
  // Predicated region
  $region62: #{attention_decoder_bahdanau.1} parent=0 // pred_check
    _
  $region63: #{attention_decoder_bahdanau.1} parent=0 // pred_check_branch
    %60 = sbr.rel (0) target = $region65
  $region64: #{attention_decoder_bahdanau.1} parent=0 // pred_region
    _
  $region65: #{attention_decoder_bahdanau.1} parent=0 // pred_fallthru
    _
  // Predicated region
  $region66: #{attention_decoder_bahdanau.1} parent=0 // pred_check
    _
  $region67: #{attention_decoder_bahdanau.1} parent=0 // pred_check_branch
    %62 = sbr.rel (0) target = $region69
  $region68: #{attention_decoder_bahdanau.1} parent=0 // pred_region
    _
  $region69: #{attention_decoder_bahdanau.1} parent=0 // pred_fallthru
    _
  // Predicated region
  $region70: #{attention_decoder_bahdanau.1} parent=0 // pred_check
    _
  $region71: #{attention_decoder_bahdanau.1} parent=0 // pred_check_branch
    %64 = sbr.rel (0) target = $region73
  $region72: #{attention_decoder_bahdanau.1} parent=0 // pred_region
    _
  $region73: #{attention_decoder_bahdanau.1} parent=0 // pred_fallthru
    _
  // Predicated region
  $region74: #{attention_decoder_bahdanau.1} parent=0 // pred_check
    _
  $region75: #{attention_decoder_bahdanau.1} parent=0 // pred_check_branch
    %66 = sbr.rel (0) target = $region77
  $region76: #{attention_decoder_bahdanau.1} parent=0 // pred_region
    _
  $region77: #{attention_decoder_bahdanau.1} parent=0 // pred_fallthru
    _
  // Predicated region
  $region78: #{attention_decoder_bahdanau.1} parent=0 // pred_check
    _
  $region79: #{attention_decoder_bahdanau.1} parent=0 // pred_check_branch
    %68 = sbr.rel (0) target = $region81
  $region80: #{attention_decoder_bahdanau.1} parent=0 // pred_region
    _
  $region81: #{attention_decoder_bahdanau.1} parent=0 // pred_fallthru
    _
  // Predicated region
  $region82: #{attention_decoder_bahdanau.1} parent=0 // pred_check
    _
  $region83: #{attention_decoder_bahdanau.1} parent=0 // pred_check_branch
    %70 = sbr.rel (0) target = $region85
  $region84: #{attention_decoder_bahdanau.1} parent=0 // pred_region
    _
  $region85: #{attention_decoder_bahdanau.1} parent=0 // pred_fallthru
    _
  // Predicated region
  $region86: #{attention_decoder_bahdanau.1} parent=0 // pred_check
    _
  $region87: #{attention_decoder_bahdanau.1} parent=0 // pred_check_branch
    %72 = sbr.rel (0) target = $region89
  $region88: #{attention_decoder_bahdanau.1} parent=0 // pred_region
    _
  $region89: #{attention_decoder_bahdanau.1} parent=0 // pred_fallthru
    _
  %v73 = vld [vmem:[%s2] sm:$0xff]
  %v74 = vld [vmem:[%s1] sm:$0xff]
  %v75 = vld [vmem:[%s1 + $0x8] sm:$0xff]
  %v76 = vld [vmem:[%s1 + $0x10] sm:$0xff]
  %v77 = vld [vmem:[%s1 + $0x18] sm:$0xff]
  %v78 = vld [vmem:[%s1 + $0x20] sm:$0xff]
  %v79 = vld [vmem:[%s1 + $0x28] sm:$0xff]
  %v80 = vld [vmem:[%s1 + $0x30] sm:$0xff]
  %v81 = vld [vmem:[%s1 + $0x38] sm:$0xff]
  %v82 = vld [vmem:[%s0] sm:$0xff]
  %v83 = vld [vmem:[%s0 + $0x8] sm:$0xff]
  %v84 = vld [vmem:[%s0 + $0x10] sm:$0xff]
  %v85 = vld [vmem:[%s0 + $0x18] sm:$0xff]
  %v86 = vld [vmem:[%s0 + $0x20] sm:$0xff]
  %v87 = vld [vmem:[%s0 + $0x28] sm:$0xff]
  %v88 = vld [vmem:[%s0 + $0x30] sm:$0xff]
  %v89 = vld [vmem:[%s0 + $0x38] sm:$0xff]
  %v90 = vld [vmem:[%s0 + $0x40] sm:$0xff]
  %v91 = vld [vmem:[%s0 + $0x48] sm:$0xff]
  %v92 = vld [vmem:[%s0 + $0x50] sm:$0xff]
  %v93 = vld [vmem:[%s0 + $0x58] sm:$0xff]
  %v94 = vld [vmem:[%s0 + $0x60] sm:$0xff]
  %v95 = vld [vmem:[%s0 + $0x68] sm:$0xff]
  %v96 = vld [vmem:[%s0 + $0x70] sm:$0xff]
  %v97 = vld [vmem:[%s0 + $0x78] sm:$0xff]
  %v98 = vld [vmem:[%s7] sm:$0xff]
  %v99 = vld [vmem:[%s7 + $0x8] sm:$0xff]
  %v100 = vld [vmem:[%s7 + $0x10] sm:$0xff]
  %v101 = vld [vmem:[%s7 + $0x18] sm:$0xff]
  %v102 = vld [vmem:[%s7 + $0x20] sm:$0xff]
  %v103 = vld [vmem:[%s7 + $0x28] sm:$0xff]
  %v104 = vld [vmem:[%s7 + $0x30] sm:$0xff]
  %v105 = vld [vmem:[%s7 + $0x38] sm:$0xff]
  %v106 = vld [vmem:[%s7 + $0x40] sm:$0xff]
  %v107 = vld [vmem:[%s7 + $0x48] sm:$0xff]
  %v108 = vld [vmem:[%s7 + $0x50] sm:$0xff]
  %v109 = vld [vmem:[%s7 + $0x58] sm:$0xff]
  %v110 = vld [vmem:[%s7 + $0x60] sm:$0xff]
  %v111 = vld [vmem:[%s7 + $0x68] sm:$0xff]
  %v112 = vld [vmem:[%s7 + $0x70] sm:$0xff]
  %v113 = vld [vmem:[%s7 + $0x78] sm:$0xff]
  %v114 = vld [vmem:[%s7 + $0x80] sm:$0xff]
  %v115 = vld [vmem:[%s7 + $0x88] sm:$0xff]
  %v116 = vld [vmem:[%s7 + $0x90] sm:$0xff]
  %v117 = vld [vmem:[%s7 + $0x98] sm:$0xff]
  %v118 = vld [vmem:[%s7 + $0xa0] sm:$0xff]
  %v119 = vld [vmem:[%s7 + $0xa8] sm:$0xff]
  %v120 = vld [vmem:[%s7 + $0xb0] sm:$0xff]
  %v121 = vld [vmem:[%s7 + $0xb8] sm:$0xff]
  %v122 = vld [vmem:[%s7 + $0xc0] sm:$0xff]
  %v123 = vld [vmem:[%s7 + $0xc8] sm:$0xff]
  %v124 = vld [vmem:[%s7 + $0xd0] sm:$0xff]
  %v125 = vld [vmem:[%s7 + $0xd8] sm:$0xff]
  %v126 = vld [vmem:[%s7 + $0xe0] sm:$0xff]
  %v127 = vld [vmem:[%s7 + $0xe8] sm:$0xff]
  %v128 = vld [vmem:[%s7 + $0xf0] sm:$0xff]
  %v129 = vld [vmem:[%s7 + $0xf8] sm:$0xff]
  %130 = vmatprep.subr.mxu0 0.0
  %131 = vmatpush1.msra.mxu0 %v98
  %132 = vmatprep.subr.mxu0 0.0
  %133 = vmatpush1.msra.mxu0 %v99
  %134 = vmatprep.subr.mxu0 0.0
  %135 = vmatpush1.msra.mxu0 %v100
  %136 = vmatprep.subr.mxu0 0.0
  %137 = vmatpush1.msra.mxu0 %v101
  %138 = vmatprep.subr.mxu0 0.0
  %139 = vmatpush1.msra.mxu0 %v102
  %140 = vmatprep.subr.mxu0 0.0
  %141 = vmatpush1.msra.mxu0 %v103
  %142 = vmatprep.subr.mxu0 0.0
  %143 = vmatpush1.msra.mxu0 %v104
  %144 = vmatprep.subr.mxu0 0.0
  %145 = vmatpush1.msra.mxu0 %v105
  %146 = vmatprep.subr.mxu0 0.0
  %147 = vmatpush1.msra.mxu0 %v106
  %148 = vmatprep.subr.mxu0 0.0
  %149 = vmatpush1.msra.mxu0 %v107
  %150 = vmatprep.subr.mxu0 0.0
  %151 = vmatpush1.msra.mxu0 %v108
  %152 = vmatprep.subr.mxu0 0.0
  %153 = vmatpush1.msra.mxu0 %v109
  %154 = vmatprep.subr.mxu0 0.0
  %155 = vmatpush1.msra.mxu0 %v110
  %156 = vmatprep.subr.mxu0 0.0
  %157 = vmatpush1.msra.mxu0 %v111
  %158 = vmatprep.subr.mxu0 0.0
  %159 = vmatpush1.msra.mxu0 %v112
  %160 = vmatprep.subr.mxu0 0.0
  %161 = vmatpush1.msra.mxu0 %v113
  %162 = vmatprep.subr.mxu0 0.0
  %163 = vmatpush1.msra.mxu0 %v114
  %164 = vmatprep.subr.mxu0 0.0
  %165 = vmatpush1.msra.mxu0 %v115
  %166 = vmatprep.subr.mxu0 0.0
  %167 = vmatpush1.msra.mxu0 %v116
  %168 = vmatprep.subr.mxu0 0.0
  %169 = vmatpush1.msra.mxu0 %v117
  %170 = vmatprep.subr.mxu0 0.0
  %171 = vmatpush1.msra.mxu0 %v118
  %172 = vmatprep.subr.mxu0 0.0
  %173 = vmatpush1.msra.mxu0 %v119
  %174 = vmatprep.subr.mxu0 0.0
  %175 = vmatpush1.msra.mxu0 %v120
  %176 = vmatprep.subr.mxu0 0.0
  %177 = vmatpush1.msra.mxu0 %v121
  %178 = vmatprep.subr.mxu0 0.0
  %179 = vmatpush1.msra.mxu0 %v122
  %180 = vmatprep.subr.mxu0 0.0
  %181 = vmatpush1.msra.mxu0 %v123
  %182 = vmatprep.subr.mxu0 0.0
  %183 = vmatpush1.msra.mxu0 %v124
  %184 = vmatprep.subr.mxu0 0.0
  %185 = vmatpush1.msra.mxu0 %v125
  %186 = vmatprep.subr.mxu0 0.0
  %187 = vmatpush1.msra.mxu0 %v126
  %188 = vmatprep.subr.mxu0 0.0
  %189 = vmatpush1.msra.mxu0 %v127
  %190 = vmatprep.subr.mxu0 0.0
  %191 = vmatpush1.msra.mxu0 %v128
  %192 = vmatprep.subr.mxu0 0.0
  %193 = vmatpush1.msra.mxu0 %v129
  %194 = vmatprep.mubr.f32.mxu0 %v83
  %195 = vmatmul.mubr.f32.gmra.mrb[0].mxu0 %v82
  %v196 = vpop.f32.mrb[0].mxu0
  %v197 = vadd.f32 0.0, %v196
  %v198 = vpop.f32.mrb[0].mxu0
  %199 = vmatprep.mubr.f32.mxu0 %v85
  %200 = vmatmul.mubr.f32.gmra.mrb[0].mxu0 %v84
  %v201 = vpop.f32.mrb[0].mxu0
  %v202 = vadd.f32 0.0, %v201
  %v203 = vpop.f32.mrb[0].mxu0
  %204 = vmatprep.mubr.f32.mxu0 %v87
  %205 = vmatmul.mubr.f32.gmra.mrb[0].mxu0 %v86
  %v206 = vpop.f32.mrb[0].mxu0
  %v207 = vadd.f32 0.0, %v206
  %v208 = vpop.f32.mrb[0].mxu0
  %209 = vmatprep.mubr.f32.mxu0 %v89
  %210 = vmatmul.mubr.f32.gmra.mrb[0].mxu0 %v88
  %v211 = vpop.f32.mrb[0].mxu0
  %v212 = vadd.f32 0.0, %v211
  %v213 = vpop.f32.mrb[0].mxu0
  %214 = vmatprep.mubr.f32.mxu0 %v91
  %215 = vmatmul.mubr.f32.gmra.mrb[0].mxu0 %v90
  %v216 = vpop.f32.mrb[0].mxu0
  %v217 = vadd.f32 0.0, %v216
  %v218 = vpop.f32.mrb[0].mxu0
  %219 = vmatprep.mubr.f32.mxu0 %v93
  %220 = vmatmul.mubr.f32.gmra.mrb[0].mxu0 %v92
  %v221 = vpop.f32.mrb[0].mxu0
  %v222 = vadd.f32 0.0, %v221
  %v223 = vpop.f32.mrb[0].mxu0
  %224 = vmatprep.mubr.f32.mxu0 %v95
  %225 = vmatmul.mubr.f32.gmra.mrb[0].mxu0 %v94
  %v226 = vpop.f32.mrb[0].mxu0
  %v227 = vadd.f32 0.0, %v226
  %v228 = vpop.f32.mrb[0].mxu0
  %229 = vmatprep.mubr.f32.mxu0 %v97
  %230 = vmatmul.mubr.f32.gmra.mrb[0].mxu0 %v96
  %v231 = vpop.f32.mrb[0].mxu0
  %v232 = vadd.f32 0.0, %v231
  %v233 = vpop.f32.mrb[0].mxu0
  %234 = vdwg.mxu0
  %v235 = vtanh.pop %v197
  %v236 = vtanh.pop %v202
  %v237 = vtanh.pop %v207
  %v238 = vtanh.pop %v212
  %v239 = vtanh.pop %v217
  %v240 = vtanh.pop %v222
  %v241 = vtanh.pop %v227
  %v242 = vtanh.pop %v232
  %v243 = vld [vmem:[%s8] sm:$0x1]
  %v245 = vlaneseq
  %v246 = vshrl.u32 %v245, 7
  %v247 = vsub.s32 0, %v246
  %v248 = vrot.slane %v243, %v247
  %v250 = vmul.f32 %v235, %v248
  %v251 = vmul.f32 %v236, %v248
  %v252 = vmul.f32 %v237, %v248
  %v253 = vmul.f32 %v238, %v248
  %v254 = vmul.f32 %v239, %v248
  %v255 = vmul.f32 %v240, %v248
  %v256 = vmul.f32 %v241, %v248
  %v257 = vmul.f32 %v242, %v248
  %258 = vadd.xlane.f32.xlu0 %v250
  %v259 = vpop.xlane.xlu0 %258
  %260 = vadd.xlane.f32.xlu0 %v251
  %v261 = vpop.xlane.xlu0 %260
  %262 = vadd.xlane.f32.xlu0 %v252
  %v263 = vpop.xlane.xlu0 %262
  %264 = vadd.xlane.f32.xlu0 %v253
  %v265 = vpop.xlane.xlu0 %264
  %266 = vadd.xlane.f32.xlu0 %v254
  %v267 = vpop.xlane.xlu0 %266
  %268 = vadd.xlane.f32.xlu0 %v255
  %v269 = vpop.xlane.xlu0 %268
  %270 = vadd.xlane.f32.xlu0 %v256
  %v271 = vpop.xlane.xlu0 %270
  %272 = vadd.xlane.f32.xlu0 %v257
  %v273 = vpop.xlane.xlu0 %272
  %v274 = vld [vmem:[%s6] sm:$0xff]
  %v275 = vld [vmem:[%s5] sm:$0xff]
  %v276 = vld [vmem:[%s5 + $0x8] sm:$0xff]
  %v277 = vld [vmem:[%s5 + $0x10] sm:$0xff]
  %v278 = vld [vmem:[%s5 + $0x18] sm:$0xff]
  %v279 = vld [vmem:[%s5 + $0x20] sm:$0xff]
  %v280 = vld [vmem:[%s5 + $0x28] sm:$0xff]
  %v281 = vld [vmem:[%s5 + $0x30] sm:$0xff]
  %v282 = vld [vmem:[%s5 + $0x38] sm:$0xff]
  %v283 = vmul.f32 %v275, %v259
  %v284 = vmul.f32 %v276, %v261
  %v285 = vmul.f32 %v277, %v263
  %v286 = vmul.f32 %v278, %v265
  %v287 = vmul.f32 %v279, %v267
  %v288 = vmul.f32 %v280, %v269
  %v289 = vmul.f32 %v281, %v271
  %v290 = vmul.f32 %v282, %v273
  %vm291 = vcmask 523264
  %v293 = vsel %vm291, %v274, 0
  %295 = vmatprep.subr.mxu0 0.0
  %296 = vmatpush1.msra.mxu0 %v283
  %297 = vmatprep.subr.mxu0 0.0
  %298 = vmatpush1.msra.mxu0 %v284
  %299 = vmatprep.subr.mxu0 0.0
  %300 = vmatpush1.msra.mxu0 %v285
  %301 = vmatprep.subr.mxu0 0.0
  %302 = vmatpush1.msra.mxu0 %v286
  %303 = vmatprep.subr.mxu0 0.0
  %304 = vmatpush1.msra.mxu0 %v287
  %305 = vmatprep.subr.mxu0 0.0
  %306 = vmatpush1.msra.mxu0 %v288
  %307 = vmatprep.subr.mxu0 0.0
  %308 = vmatpush1.msra.mxu0 %v289
  %309 = vmatprep.subr.mxu0 0.0
  %310 = vmatpush1.msra.mxu0 %v290
  %311 = vmatprep.subr.mxu0 0.0
  %312 = vmatpush1.msra.mxu0 0.0
  %313 = vmatprep.subr.mxu0 0.0
  %314 = vmatpush1.msra.mxu0 0.0
  %315 = vmatprep.subr.mxu0 0.0
  %316 = vmatpush1.msra.mxu0 0.0
  %317 = vmatprep.subr.mxu0 0.0
  %318 = vmatpush1.msra.mxu0 0.0
  %319 = vmatprep.subr.mxu0 0.0
  %320 = vmatpush1.msra.mxu0 0.0
  %321 = vmatprep.subr.mxu0 0.0
  %322 = vmatpush1.msra.mxu0 0.0
  %323 = vmatprep.subr.mxu0 0.0
  %324 = vmatpush1.msra.mxu0 0.0
  %325 = vmatprep.subr.mxu0 0.0
  %326 = vmatpush1.msra.mxu0 0.0
  %327 = vmatprep.subr.mxu0 0.0
  %328 = vmatpush1.msra.mxu0 0.0
  %329 = vmatprep.subr.mxu0 0.0
  %330 = vmatpush1.msra.mxu0 0.0
  %331 = vmatprep.subr.mxu0 0.0
  %332 = vmatpush1.msra.mxu0 0.0
  %333 = vmatprep.subr.mxu0 0.0
  %334 = vmatpush1.msra.mxu0 0.0
  %335 = vmatprep.subr.mxu0 0.0
  %336 = vmatpush1.msra.mxu0 0.0
  %337 = vmatprep.subr.mxu0 0.0
  %338 = vmatpush1.msra.mxu0 0.0
  %339 = vmatprep.subr.mxu0 0.0
  %340 = vmatpush1.msra.mxu0 0.0
  %341 = vmatprep.subr.mxu0 0.0
  %342 = vmatpush1.msra.mxu0 0.0
  %343 = vmatprep.subr.mxu0 0.0
  %344 = vmatpush1.msra.mxu0 0.0
  %345 = vmatprep.subr.mxu0 0.0
  %346 = vmatpush1.msra.mxu0 0.0
  %347 = vmatprep.subr.mxu0 0.0
  %348 = vmatpush1.msra.mxu0 0.0
  %349 = vmatprep.subr.mxu0 0.0
  %350 = vmatpush1.msra.mxu0 0.0
  %351 = vmatprep.subr.mxu0 0.0
  %352 = vmatpush1.msra.mxu0 0.0
  %353 = vmatprep.subr.mxu0 0.0
  %354 = vmatpush1.msra.mxu0 0.0
  %355 = vmatprep.subr.mxu0 0.0
  %356 = vmatpush1.msra.mxu0 0.0
  %357 = vmatprep.subr.mxu0 0.0
  %358 = vmatpush1.msra.mxu0 0.0
  %359 = vmatprep.mubr.f32.mxu0 0.0
  %360 = vmatmul.mubr.f32.gmra.mrb[0].mxu0 %v293
  %v361 = vpop.f32.mrb[0].mxu0
  %v362 = vadd.f32 0.0, %v361
  %v363 = vpop.f32.mrb[0].mxu0
  %364 = vdwg.mxu0
  %vm365 = vcmask 64512
  %v366 = vsel %vm365, %v362, -inf
  %367 = vmax.xlane.f32.xlu0 %v366
  %v368 = vpop.xlane.xlu0 %367
  %v369 = vsub.f32 %v362, %v368
  %v370 = vmul.f32 %v369, 1.442695
  %v371 = vpow.pop %v370
  %v372 = vsel %vm365, %v371, 0.0
  %373 = vadd.xlane.f32.xlu0 %v372
  %v374 = vpop.xlane.xlu0 %373
  %v375 = vrcp.pop %v374
  %v376 = vmul.f32 %v371, %v375
  %v377 = vld [vmem:[%s4] sm:$0xff]
  %v379 = vsel %vm365, %v376, 0
  %381 = vmatprep.subr.mxu0 0.0
  %382 = vmatpush1.msra.mxu0 %v377
  %383 = vmatprep.subr.mxu0 0.0
  %384 = vmatpush1.msra.mxu0 0.0
  %385 = vmatprep.subr.mxu0 0.0
  %386 = vmatpush1.msra.mxu0 0.0
  %387 = vmatprep.subr.mxu0 0.0
  %388 = vmatpush1.msra.mxu0 0.0
  %389 = vmatprep.subr.mxu0 0.0
  %390 = vmatpush1.msra.mxu0 0.0
  %391 = vmatprep.subr.mxu0 0.0
  %392 = vmatpush1.msra.mxu0 0.0
  %393 = vmatprep.subr.mxu0 0.0
  %394 = vmatpush1.msra.mxu0 0.0
  %395 = vmatprep.subr.mxu0 0.0
  %396 = vmatpush1.msra.mxu0 0.0
  %397 = vmatprep.subr.mxu0 0.0
  %398 = vmatpush1.msra.mxu0 0.0
  %399 = vmatprep.subr.mxu0 0.0
  %400 = vmatpush1.msra.mxu0 0.0
  %401 = vmatprep.subr.mxu0 0.0
  %402 = vmatpush1.msra.mxu0 0.0
  %403 = vmatprep.subr.mxu0 0.0
  %404 = vmatpush1.msra.mxu0 0.0
  %405 = vmatprep.subr.mxu0 0.0
  %406 = vmatpush1.msra.mxu0 0.0
  %407 = vmatprep.subr.mxu0 0.0
  %408 = vmatpush1.msra.mxu0 0.0
  %409 = vmatprep.subr.mxu0 0.0
  %410 = vmatpush1.msra.mxu0 0.0
  %411 = vmatprep.subr.mxu0 0.0
  %412 = vmatpush1.msra.mxu0 0.0
  %413 = vmatprep.subr.mxu0 0.0
  %414 = vmatpush1.msra.mxu0 0.0
  %415 = vmatprep.subr.mxu0 0.0
  %416 = vmatpush1.msra.mxu0 0.0
  %417 = vmatprep.subr.mxu0 0.0
  %418 = vmatpush1.msra.mxu0 0.0
  %419 = vmatprep.subr.mxu0 0.0
  %420 = vmatpush1.msra.mxu0 0.0
  %421 = vmatprep.subr.mxu0 0.0
  %422 = vmatpush1.msra.mxu0 0.0
  %423 = vmatprep.subr.mxu0 0.0
  %424 = vmatpush1.msra.mxu0 0.0
  %425 = vmatprep.subr.mxu0 0.0
  %426 = vmatpush1.msra.mxu0 0.0
  %427 = vmatprep.subr.mxu0 0.0
  %428 = vmatpush1.msra.mxu0 0.0
  %429 = vmatprep.subr.mxu0 0.0
  %430 = vmatpush1.msra.mxu0 0.0
  %431 = vmatprep.subr.mxu0 0.0
  %432 = vmatpush1.msra.mxu0 0.0
  %433 = vmatprep.subr.mxu0 0.0
  %434 = vmatpush1.msra.mxu0 0.0
  %435 = vmatprep.subr.mxu0 0.0
  %436 = vmatpush1.msra.mxu0 0.0
  %437 = vmatprep.subr.mxu0 0.0
  %438 = vmatpush1.msra.mxu0 0.0
  %439 = vmatprep.subr.mxu0 0.0
  %440 = vmatpush1.msra.mxu0 0.0
  %441 = vmatprep.subr.mxu0 0.0
  %442 = vmatpush1.msra.mxu0 0.0
  %443 = vmatprep.subr.mxu0 0.0
  %444 = vmatpush1.msra.mxu0 0.0
  %445 = vmatprep.mubr.f32.mxu0 0.0
  %446 = vmatmul.mubr.f32.gmra.mrb[0].mxu0 %v379
  %v447 = vpop.f32.mrb[0].mxu0
  %v448 = vadd.f32 0.0, %v447
  %v449 = vpop.f32.mrb[0].mxu0
  %450 = vdwg.mxu0
  %v451 = vmul.f32 %v448, %v274
  %v453 = vsel %vm291, %v451, 0
  %455 = vmatprep.subr.mxu0 0.0
  %456 = vmatpush1.msra.mxu0 %v74
  %457 = vmatprep.subr.mxu0 0.0
  %458 = vmatpush1.msra.mxu0 %v75
  %459 = vmatprep.subr.mxu0 0.0
  %460 = vmatpush1.msra.mxu0 %v76
  %461 = vmatprep.subr.mxu0 0.0
  %462 = vmatpush1.msra.mxu0 %v77
  %463 = vmatprep.subr.mxu0 0.0
  %464 = vmatpush1.msra.mxu0 %v78
  %465 = vmatprep.subr.mxu0 0.0
  %466 = vmatpush1.msra.mxu0 %v79
  %467 = vmatprep.subr.mxu0 0.0
  %468 = vmatpush1.msra.mxu0 %v80
  %469 = vmatprep.subr.mxu0 0.0
  %470 = vmatpush1.msra.mxu0 %v81
  %471 = vmatprep.subr.mxu0 0.0
  %472 = vmatpush1.msra.mxu0 0.0
  %473 = vmatprep.subr.mxu0 0.0
  %474 = vmatpush1.msra.mxu0 0.0
  %475 = vmatprep.subr.mxu0 0.0
  %476 = vmatpush1.msra.mxu0 0.0
  %477 = vmatprep.subr.mxu0 0.0
  %478 = vmatpush1.msra.mxu0 0.0
  %479 = vmatprep.subr.mxu0 0.0
  %480 = vmatpush1.msra.mxu0 0.0
  %481 = vmatprep.subr.mxu0 0.0
  %482 = vmatpush1.msra.mxu0 0.0
  %483 = vmatprep.subr.mxu0 0.0
  %484 = vmatpush1.msra.mxu0 0.0
  %485 = vmatprep.subr.mxu0 0.0
  %486 = vmatpush1.msra.mxu0 0.0
  %487 = vmatprep.subr.mxu0 0.0
  %488 = vmatpush1.msra.mxu0 0.0
  %489 = vmatprep.subr.mxu0 0.0
  %490 = vmatpush1.msra.mxu0 0.0
  %491 = vmatprep.subr.mxu0 0.0
  %492 = vmatpush1.msra.mxu0 0.0
  %493 = vmatprep.subr.mxu0 0.0
  %494 = vmatpush1.msra.mxu0 0.0
  %495 = vmatprep.subr.mxu0 0.0
  %496 = vmatpush1.msra.mxu0 0.0
  %497 = vmatprep.subr.mxu0 0.0
  %498 = vmatpush1.msra.mxu0 0.0
  %499 = vmatprep.subr.mxu0 0.0
  %500 = vmatpush1.msra.mxu0 0.0
  %501 = vmatprep.subr.mxu0 0.0
  %502 = vmatpush1.msra.mxu0 0.0
  %503 = vmatprep.subr.mxu0 0.0
  %504 = vmatpush1.msra.mxu0 0.0
  %505 = vmatprep.subr.mxu0 0.0
  %506 = vmatpush1.msra.mxu0 0.0
  %507 = vmatprep.subr.mxu0 0.0
  %508 = vmatpush1.msra.mxu0 0.0
  %509 = vmatprep.subr.mxu0 0.0
  %510 = vmatpush1.msra.mxu0 0.0
  %511 = vmatprep.subr.mxu0 0.0
  %512 = vmatpush1.msra.mxu0 0.0
  %513 = vmatprep.subr.mxu0 0.0
  %514 = vmatpush1.msra.mxu0 0.0
  %515 = vmatprep.subr.mxu0 0.0
  %516 = vmatpush1.msra.mxu0 0.0
  %517 = vmatprep.subr.mxu0 0.0
  %518 = vmatpush1.msra.mxu0 0.0
  %519 = vmatprep.mubr.f32.mxu0 0.0
  %520 = vmatmul.mubr.f32.gmra.mrb[0].mxu0 %v453
  %v521 = vpop.f32.mrb[0].mxu0
  %v522 = vadd.f32 0.0, %v521
  %v523 = vpop.f32.mrb[0].mxu0
  %524 = vdwg.mxu0
  %v525 = vld [vmem:[%s9] sm:$0xff]
  %v526 = vld [vmem:[%s9 + $0x8] sm:$0xff]
  %v527 = vld [vmem:[%s9 + $0x10] sm:$0xff]
  %v528 = vld [vmem:[%s9 + $0x18] sm:$0xff]
  %v529 = vld [vmem:[%s9 + $0x20] sm:$0xff]
  %v530 = vld [vmem:[%s9 + $0x28] sm:$0xff]
  %v531 = vld [vmem:[%s9 + $0x30] sm:$0xff]
  %v532 = vld [vmem:[%s9 + $0x38] sm:$0xff]
  %v533 = vld [vmem:[%s9 + $0x40] sm:$0xff]
  %v534 = vld [vmem:[%s9 + $0x48] sm:$0xff]
  %v535 = vld [vmem:[%s9 + $0x50] sm:$0xff]
  %v536 = vld [vmem:[%s9 + $0x58] sm:$0xff]
  %v537 = vld [vmem:[%s9 + $0x60] sm:$0xff]
  %v538 = vld [vmem:[%s9 + $0x68] sm:$0xff]
  %v539 = vld [vmem:[%s9 + $0x70] sm:$0xff]
  %v540 = vld [vmem:[%s9 + $0x78] sm:$0xff]
  %v541 = vld [vmem:[%s10] sm:$0xff]
  %v542 = vld [vmem:[%s10 + $0x8] sm:$0xff]
  %v543 = vld [vmem:[%s10 + $0x10] sm:$0xff]
  %v544 = vld [vmem:[%s10 + $0x18] sm:$0xff]
  %v545 = vld [vmem:[%s10 + $0x20] sm:$0xff]
  %v546 = vld [vmem:[%s10 + $0x28] sm:$0xff]
  %v547 = vld [vmem:[%s10 + $0x30] sm:$0xff]
  %v548 = vld [vmem:[%s10 + $0x38] sm:$0xff]
  %v549 = vld [vmem:[%s10 + $0x40] sm:$0xff]
  %v550 = vld [vmem:[%s10 + $0x48] sm:$0xff]
  %v551 = vld [vmem:[%s10 + $0x50] sm:$0xff]
  %v552 = vld [vmem:[%s10 + $0x58] sm:$0xff]
  %v553 = vld [vmem:[%s10 + $0x60] sm:$0xff]
  %v554 = vld [vmem:[%s10 + $0x68] sm:$0xff]
  %v555 = vld [vmem:[%s10 + $0x70] sm:$0xff]
  %v556 = vld [vmem:[%s10 + $0x78] sm:$0xff]
  %557 = vmatprep.subr.mxu0 0.0
  %558 = vmatpush1.msra.mxu0 %v541
  %559 = vmatprep.subr.mxu0 0.0
  %560 = vmatpush1.msra.mxu0 %v542
  %561 = vmatprep.subr.mxu0 0.0
  %562 = vmatpush1.msra.mxu0 %v543
  %563 = vmatprep.subr.mxu0 0.0
  %564 = vmatpush1.msra.mxu0 %v544
  %565 = vmatprep.subr.mxu0 0.0
  %566 = vmatpush1.msra.mxu0 %v545
  %567 = vmatprep.subr.mxu0 0.0
  %568 = vmatpush1.msra.mxu0 %v546
  %569 = vmatprep.subr.mxu0 0.0
  %570 = vmatpush1.msra.mxu0 %v547
  %571 = vmatprep.subr.mxu0 0.0
  %572 = vmatpush1.msra.mxu0 %v548
  %573 = vmatprep.subr.mxu0 0.0
  %574 = vmatpush1.msra.mxu0 %v549
  %575 = vmatprep.subr.mxu0 0.0
  %576 = vmatpush1.msra.mxu0 %v550
  %577 = vmatprep.subr.mxu0 0.0
  %578 = vmatpush1.msra.mxu0 %v551
  %579 = vmatprep.subr.mxu0 0.0
  %580 = vmatpush1.msra.mxu0 %v552
  %581 = vmatprep.subr.mxu0 0.0
  %582 = vmatpush1.msra.mxu0 %v553
  %583 = vmatprep.subr.mxu0 0.0
  %584 = vmatpush1.msra.mxu0 %v554
  %585 = vmatprep.subr.mxu0 0.0
  %586 = vmatpush1.msra.mxu0 %v555
  %587 = vmatprep.subr.mxu0 0.0
  %588 = vmatpush1.msra.mxu0 %v556
  %589 = vmatprep.subr.mxu0 0.0
  %590 = vmatpush1.msra.mxu0 0.0
  %591 = vmatprep.subr.mxu0 0.0
  %592 = vmatpush1.msra.mxu0 0.0
  %593 = vmatprep.subr.mxu0 0.0
  %594 = vmatpush1.msra.mxu0 0.0
  %595 = vmatprep.subr.mxu0 0.0
  %596 = vmatpush1.msra.mxu0 0.0
  %597 = vmatprep.subr.mxu0 0.0
  %598 = vmatpush1.msra.mxu0 0.0
  %599 = vmatprep.subr.mxu0 0.0
  %600 = vmatpush1.msra.mxu0 0.0
  %601 = vmatprep.subr.mxu0 0.0
  %602 = vmatpush1.msra.mxu0 0.0
  %603 = vmatprep.subr.mxu0 0.0
  %604 = vmatpush1.msra.mxu0 0.0
  %605 = vmatprep.subr.mxu0 0.0
  %606 = vmatpush1.msra.mxu0 0.0
  %607 = vmatprep.subr.mxu0 0.0
  %608 = vmatpush1.msra.mxu0 0.0
  %609 = vmatprep.subr.mxu0 0.0
  %610 = vmatpush1.msra.mxu0 0.0
  %611 = vmatprep.subr.mxu0 0.0
  %612 = vmatpush1.msra.mxu0 0.0
  %613 = vmatprep.subr.mxu0 0.0
  %614 = vmatpush1.msra.mxu0 0.0
  %615 = vmatprep.subr.mxu0 0.0
  %616 = vmatpush1.msra.mxu0 0.0
  %617 = vmatprep.subr.mxu0 0.0
  %618 = vmatpush1.msra.mxu0 0.0
  %619 = vmatprep.subr.mxu0 0.0
  %620 = vmatpush1.msra.mxu0 0.0
  %621 = vmatprep.mubr.f32.mxu0 0.0
  %622 = vmatmul.mubr.f32.gmra.mrb[0].mxu0 %v522
  %v623 = vpop.f32.mrb[0].mxu0
  %v624 = vadd.f32 0.0, %v623
  %v625 = vpop.f32.mrb[0].mxu0
  %626 = vdwg.mxu0
  %627 = vmatprep.subr.mxu0 0.0
  %628 = vmatpush1.msra.mxu0 %v525
  %629 = vmatprep.subr.mxu0 0.0
  %630 = vmatpush1.msra.mxu0 %v526
  %631 = vmatprep.subr.mxu0 0.0
  %632 = vmatpush1.msra.mxu0 %v527
  %633 = vmatprep.subr.mxu0 0.0
  %634 = vmatpush1.msra.mxu0 %v528
  %635 = vmatprep.subr.mxu0 0.0
  %636 = vmatpush1.msra.mxu0 %v529
  %637 = vmatprep.subr.mxu0 0.0
  %638 = vmatpush1.msra.mxu0 %v530
  %639 = vmatprep.subr.mxu0 0.0
  %640 = vmatpush1.msra.mxu0 %v531
  %641 = vmatprep.subr.mxu0 0.0
  %642 = vmatpush1.msra.mxu0 %v532
  %643 = vmatprep.subr.mxu0 0.0
  %644 = vmatpush1.msra.mxu0 %v533
  %645 = vmatprep.subr.mxu0 0.0
  %646 = vmatpush1.msra.mxu0 %v534
  %647 = vmatprep.subr.mxu0 0.0
  %648 = vmatpush1.msra.mxu0 %v535
  %649 = vmatprep.subr.mxu0 0.0
  %650 = vmatpush1.msra.mxu0 %v536
  %651 = vmatprep.subr.mxu0 0.0
  %652 = vmatpush1.msra.mxu0 %v537
  %653 = vmatprep.subr.mxu0 0.0
  %654 = vmatpush1.msra.mxu0 %v538
  %655 = vmatprep.subr.mxu0 0.0
  %656 = vmatpush1.msra.mxu0 %v539
  %657 = vmatprep.subr.mxu0 0.0
  %658 = vmatpush1.msra.mxu0 %v540
  %659 = vmatprep.subr.mxu0 0.0
  %660 = vmatpush1.msra.mxu0 0.0
  %661 = vmatprep.subr.mxu0 0.0
  %662 = vmatpush1.msra.mxu0 0.0
  %663 = vmatprep.subr.mxu0 0.0
  %664 = vmatpush1.msra.mxu0 0.0
  %665 = vmatprep.subr.mxu0 0.0
  %666 = vmatpush1.msra.mxu0 0.0
  %667 = vmatprep.subr.mxu0 0.0
  %668 = vmatpush1.msra.mxu0 0.0
  %669 = vmatprep.subr.mxu0 0.0
  %670 = vmatpush1.msra.mxu0 0.0
  %671 = vmatprep.subr.mxu0 0.0
  %672 = vmatpush1.msra.mxu0 0.0
  %673 = vmatprep.subr.mxu0 0.0
  %674 = vmatpush1.msra.mxu0 0.0
  %675 = vmatprep.subr.mxu0 0.0
  %676 = vmatpush1.msra.mxu0 0.0
  %677 = vmatprep.subr.mxu0 0.0
  %678 = vmatpush1.msra.mxu0 0.0
  %679 = vmatprep.subr.mxu0 0.0
  %680 = vmatpush1.msra.mxu0 0.0
  %681 = vmatprep.subr.mxu0 0.0
  %682 = vmatpush1.msra.mxu0 0.0
  %683 = vmatprep.subr.mxu0 0.0
  %684 = vmatpush1.msra.mxu0 0.0
  %685 = vmatprep.subr.mxu0 0.0
  %686 = vmatpush1.msra.mxu0 0.0
  %687 = vmatprep.subr.mxu0 0.0
  %688 = vmatpush1.msra.mxu0 0.0
  %689 = vmatprep.subr.mxu0 0.0
  %690 = vmatpush1.msra.mxu0 0.0
  %691 = vmatprep.mubr.f32.mxu0 0.0
  %692 = vmatmul.mubr.f32.gmra.mrb[0].mxu0 %v73
  %v693 = vpop.f32.mrb[0].mxu0
  %v694 = vadd.f32 %v624, %v693
  %v695 = vpop.f32.mrb[0].mxu0
  %696 = vdwg.mxu0
  %v697 = vld [vmem:[%s11] sm:$0x1]
  %v699 = vlaneseq
  %v700 = vshrl.u32 %v699, 7
  %v701 = vsub.s32 0, %v700
  %v702 = vrot.slane %v697, %v701
  %v704 = vadd.f32 %v694, %v702
  %v705 = vld [vmem:[%s3] sm:$0xff]
  %v706 = vld [vmem:[%s12] sm:$0xff]
  %v707 = vld [vmem:[%s12 + $0x8] sm:$0xff]
  %v708 = vld [vmem:[%s12 + $0x10] sm:$0xff]
  %v709 = vld [vmem:[%s12 + $0x18] sm:$0xff]
  %v710 = vld [vmem:[%s12 + $0x20] sm:$0xff]
  %v711 = vld [vmem:[%s12 + $0x28] sm:$0xff]
  %v712 = vld [vmem:[%s12 + $0x30] sm:$0xff]
  %v713 = vld [vmem:[%s12 + $0x38] sm:$0xff]
  %v714 = vld [vmem:[%s12 + $0x40] sm:$0xff]
  %v715 = vld [vmem:[%s12 + $0x48] sm:$0xff]
  %v716 = vld [vmem:[%s12 + $0x50] sm:$0xff]
  %v717 = vld [vmem:[%s12 + $0x58] sm:$0xff]
  %v718 = vld [vmem:[%s12 + $0x60] sm:$0xff]
  %v719 = vld [vmem:[%s12 + $0x68] sm:$0xff]
  %v720 = vld [vmem:[%s12 + $0x70] sm:$0xff]
  %v721 = vld [vmem:[%s12 + $0x78] sm:$0xff]
  %v722 = vld [vmem:[%s12 + $0x80] sm:$0xff]
  %v723 = vld [vmem:[%s12 + $0x88] sm:$0xff]
  %v724 = vld [vmem:[%s12 + $0x90] sm:$0xff]
  %v725 = vld [vmem:[%s12 + $0x98] sm:$0xff]
  %v726 = vld [vmem:[%s12 + $0xa0] sm:$0xff]
  %v727 = vld [vmem:[%s12 + $0xa8] sm:$0xff]
  %v728 = vld [vmem:[%s12 + $0xb0] sm:$0xff]
  %v729 = vld [vmem:[%s12 + $0xb8] sm:$0xff]
  %v730 = vld [vmem:[%s12 + $0xc0] sm:$0xff]
  %v731 = vld [vmem:[%s12 + $0xc8] sm:$0xff]
  %v732 = vld [vmem:[%s12 + $0xd0] sm:$0xff]
  %v733 = vld [vmem:[%s12 + $0xd8] sm:$0xff]
  %v734 = vld [vmem:[%s12 + $0xe0] sm:$0xff]
  %v735 = vld [vmem:[%s12 + $0xe8] sm:$0xff]
  %v736 = vld [vmem:[%s12 + $0xf0] sm:$0xff]
  %v737 = vld [vmem:[%s12 + $0xf8] sm:$0xff]
  %v738 = vld [vmem:[%s12 + $0x100] sm:$0xff]
  %v739 = vld [vmem:[%s12 + $0x108] sm:$0xff]
  %v740 = vld [vmem:[%s12 + $0x110] sm:$0xff]
  %v741 = vld [vmem:[%s12 + $0x118] sm:$0xff]
  %v742 = vld [vmem:[%s12 + $0x120] sm:$0xff]
  %v743 = vld [vmem:[%s12 + $0x128] sm:$0xff]
  %v744 = vld [vmem:[%s12 + $0x130] sm:$0xff]
  %v745 = vld [vmem:[%s12 + $0x138] sm:$0xff]
  %v746 = vld [vmem:[%s12 + $0x140] sm:$0xff]
  %v747 = vld [vmem:[%s12 + $0x148] sm:$0xff]
  %v748 = vld [vmem:[%s12 + $0x150] sm:$0xff]
  %v749 = vld [vmem:[%s12 + $0x158] sm:$0xff]
  %v750 = vld [vmem:[%s12 + $0x160] sm:$0xff]
  %v751 = vld [vmem:[%s12 + $0x168] sm:$0xff]
  %v752 = vld [vmem:[%s12 + $0x170] sm:$0xff]
  %v753 = vld [vmem:[%s12 + $0x178] sm:$0xff]
  %v754 = vld [vmem:[%s14] sm:$0x7]
  %v756 = vlaneseq
  %v757 = vshrl.u32 %v756, 7
  %v758 = vsub.s32 0, %v757
  %v759 = vrot.slane %v754, %v758
  %v760 = vlaneseq
  %v761 = vshrl.u32 %v760, 7
  %v762 = vsub.s32 1, %v761
  %v763 = vrot.slane %v754, %v762
  %v764 = vlaneseq
  %v765 = vshrl.u32 %v764, 7
  %v766 = vsub.s32 2, %v765
  %v767 = vrot.slane %v754, %v766
  %771 = vmatprep.subr.mxu0 %v707
  %772 = vmatpush1.msra.mxu0 %v706
  %773 = vmatprep.subr.mxu0 %v710
  %774 = vmatpush1.msra.mxu0 %v709
  %775 = vmatprep.subr.mxu0 %v713
  %776 = vmatpush1.msra.mxu0 %v712
  %777 = vmatprep.subr.mxu0 %v716
  %778 = vmatpush1.msra.mxu0 %v715
  %779 = vmatprep.subr.mxu0 %v719
  %780 = vmatpush1.msra.mxu0 %v718
  %781 = vmatprep.subr.mxu0 %v722
  %782 = vmatpush1.msra.mxu0 %v721
  %783 = vmatprep.subr.mxu0 %v725
  %784 = vmatpush1.msra.mxu0 %v724
  %785 = vmatprep.subr.mxu0 %v728
  %786 = vmatpush1.msra.mxu0 %v727
  %787 = vmatprep.subr.mxu0 %v731
  %788 = vmatpush1.msra.mxu0 %v730
  %789 = vmatprep.subr.mxu0 %v734
  %790 = vmatpush1.msra.mxu0 %v733
  %791 = vmatprep.subr.mxu0 %v737
  %792 = vmatpush1.msra.mxu0 %v736
  %793 = vmatprep.subr.mxu0 %v740
  %794 = vmatpush1.msra.mxu0 %v739
  %795 = vmatprep.subr.mxu0 %v743
  %796 = vmatpush1.msra.mxu0 %v742
  %797 = vmatprep.subr.mxu0 %v746
  %798 = vmatpush1.msra.mxu0 %v745
  %799 = vmatprep.subr.mxu0 %v749
  %800 = vmatpush1.msra.mxu0 %v748
  %801 = vmatprep.subr.mxu0 %v752
  %802 = vmatpush1.msra.mxu0 %v751
  %803 = vmatprep.subr.mxu0 0.0
  %804 = vmatpush1.msra.mxu0 0.0
  %805 = vmatprep.subr.mxu0 0.0
  %806 = vmatpush1.msra.mxu0 0.0
  %807 = vmatprep.subr.mxu0 0.0
  %808 = vmatpush1.msra.mxu0 0.0
  %809 = vmatprep.subr.mxu0 0.0
  %810 = vmatpush1.msra.mxu0 0.0
  %811 = vmatprep.subr.mxu0 0.0
  %812 = vmatpush1.msra.mxu0 0.0
  %813 = vmatprep.subr.mxu0 0.0
  %814 = vmatpush1.msra.mxu0 0.0
  %815 = vmatprep.subr.mxu0 0.0
  %816 = vmatpush1.msra.mxu0 0.0
  %817 = vmatprep.subr.mxu0 0.0
  %818 = vmatpush1.msra.mxu0 0.0
  %819 = vmatprep.subr.mxu0 0.0
  %820 = vmatpush1.msra.mxu0 0.0
  %821 = vmatprep.subr.mxu0 0.0
  %822 = vmatpush1.msra.mxu0 0.0
  %823 = vmatprep.subr.mxu0 0.0
  %824 = vmatpush1.msra.mxu0 0.0
  %825 = vmatprep.subr.mxu0 0.0
  %826 = vmatpush1.msra.mxu0 0.0
  %827 = vmatprep.subr.mxu0 0.0
  %828 = vmatpush1.msra.mxu0 0.0
  %829 = vmatprep.subr.mxu0 0.0
  %830 = vmatpush1.msra.mxu0 0.0
  %831 = vmatprep.subr.mxu0 0.0
  %832 = vmatpush1.msra.mxu0 0.0
  %833 = vmatprep.subr.mxu0 0.0
  %834 = vmatpush1.msra.mxu0 0.0
  %835 = vmatprep.mubr.f32.mxu0 0.0
  %836 = vmatmul.mubr.f32.gmra.mrb[0].mxu0 %v704
  %v837 = vpop.f32.mrb[0].mxu0
  %v838 = vadd.f32 %v759, %v837
  %v839 = vpop.f32.mrb[0].mxu0
  %v840 = vadd.f32 %v763, %v839
  %841 = vdwg.mxu0
  %842 = vmatprep.subr.mxu0 0.0
  %843 = vmatpush1.msra.mxu0 %v708
  %844 = vmatprep.subr.mxu0 0.0
  %845 = vmatpush1.msra.mxu0 %v711
  %846 = vmatprep.subr.mxu0 0.0
  %847 = vmatpush1.msra.mxu0 %v714
  %848 = vmatprep.subr.mxu0 0.0
  %849 = vmatpush1.msra.mxu0 %v717
  %850 = vmatprep.subr.mxu0 0.0
  %851 = vmatpush1.msra.mxu0 %v720
  %852 = vmatprep.subr.mxu0 0.0
  %853 = vmatpush1.msra.mxu0 %v723
  %854 = vmatprep.subr.mxu0 0.0
  %855 = vmatpush1.msra.mxu0 %v726
  %856 = vmatprep.subr.mxu0 0.0
  %857 = vmatpush1.msra.mxu0 %v729
  %858 = vmatprep.subr.mxu0 0.0
  %859 = vmatpush1.msra.mxu0 %v732
  %860 = vmatprep.subr.mxu0 0.0
  %861 = vmatpush1.msra.mxu0 %v735
  %862 = vmatprep.subr.mxu0 0.0
  %863 = vmatpush1.msra.mxu0 %v738
  %864 = vmatprep.subr.mxu0 0.0
  %865 = vmatpush1.msra.mxu0 %v741
  %866 = vmatprep.subr.mxu0 0.0
  %867 = vmatpush1.msra.mxu0 %v744
  %868 = vmatprep.subr.mxu0 0.0
  %869 = vmatpush1.msra.mxu0 %v747
  %870 = vmatprep.subr.mxu0 0.0
  %871 = vmatpush1.msra.mxu0 %v750
  %872 = vmatprep.subr.mxu0 0.0
  %873 = vmatpush1.msra.mxu0 %v753
  %874 = vmatprep.subr.mxu0 0.0
  %875 = vmatpush1.msra.mxu0 0.0
  %876 = vmatprep.subr.mxu0 0.0
  %877 = vmatpush1.msra.mxu0 0.0
  %878 = vmatprep.subr.mxu0 0.0
  %879 = vmatpush1.msra.mxu0 0.0
  %880 = vmatprep.subr.mxu0 0.0
  %881 = vmatpush1.msra.mxu0 0.0
  %882 = vmatprep.subr.mxu0 0.0
  %883 = vmatpush1.msra.mxu0 0.0
  %884 = vmatprep.subr.mxu0 0.0
  %885 = vmatpush1.msra.mxu0 0.0
  %886 = vmatprep.subr.mxu0 0.0
  %887 = vmatpush1.msra.mxu0 0.0
  %888 = vmatprep.subr.mxu0 0.0
  %889 = vmatpush1.msra.mxu0 0.0
  %890 = vmatprep.subr.mxu0 0.0
  %891 = vmatpush1.msra.mxu0 0.0
  %892 = vmatprep.subr.mxu0 0.0
  %893 = vmatpush1.msra.mxu0 0.0
  %894 = vmatprep.subr.mxu0 0.0
  %895 = vmatpush1.msra.mxu0 0.0
  %896 = vmatprep.subr.mxu0 0.0
  %897 = vmatpush1.msra.mxu0 0.0
  %898 = vmatprep.subr.mxu0 0.0
  %899 = vmatpush1.msra.mxu0 0.0
  %900 = vmatprep.subr.mxu0 0.0
  %901 = vmatpush1.msra.mxu0 0.0
  %902 = vmatprep.subr.mxu0 0.0
  %903 = vmatpush1.msra.mxu0 0.0
  %904 = vmatprep.subr.mxu0 0.0
  %905 = vmatpush1.msra.mxu0 0.0
  %906 = vmatprep.mubr.f32.mxu0 0.0
  %907 = vmatmul.mubr.f32.gmra.mrb[0].mxu0 %v704
  %v908 = vpop.f32.mrb[0].mxu0
  %v909 = vadd.f32 %v767, %v908
  %v910 = vpop.f32.mrb[0].mxu0
  %911 = vdwg.mxu0
  %v912 = vld [vmem:[%s13] sm:$0xff]
  %v913 = vld [vmem:[%s13 + $0x8] sm:$0xff]
  %v914 = vld [vmem:[%s13 + $0x10] sm:$0xff]
  %v915 = vld [vmem:[%s13 + $0x18] sm:$0xff]
  %v916 = vld [vmem:[%s13 + $0x20] sm:$0xff]
  %v917 = vld [vmem:[%s13 + $0x28] sm:$0xff]
  %v918 = vld [vmem:[%s13 + $0x30] sm:$0xff]
  %v919 = vld [vmem:[%s13 + $0x38] sm:$0xff]
  %v920 = vld [vmem:[%s13 + $0x40] sm:$0xff]
  %v921 = vld [vmem:[%s13 + $0x48] sm:$0xff]
  %v922 = vld [vmem:[%s13 + $0x50] sm:$0xff]
  %v923 = vld [vmem:[%s13 + $0x58] sm:$0xff]
  %v924 = vld [vmem:[%s13 + $0x60] sm:$0xff]
  %v925 = vld [vmem:[%s13 + $0x68] sm:$0xff]
  %v926 = vld [vmem:[%s13 + $0x70] sm:$0xff]
  %v927 = vld [vmem:[%s13 + $0x78] sm:$0xff]
  %v928 = vld [vmem:[%s13 + $0x80] sm:$0xff]
  %v929 = vld [vmem:[%s13 + $0x88] sm:$0xff]
  %v930 = vld [vmem:[%s13 + $0x90] sm:$0xff]
  %v931 = vld [vmem:[%s13 + $0x98] sm:$0xff]
  %v932 = vld [vmem:[%s13 + $0xa0] sm:$0xff]
  %v933 = vld [vmem:[%s13 + $0xa8] sm:$0xff]
  %v934 = vld [vmem:[%s13 + $0xb0] sm:$0xff]
  %v935 = vld [vmem:[%s13 + $0xb8] sm:$0xff]
  %v936 = vld [vmem:[%s13 + $0xc0] sm:$0xff]
  %v937 = vld [vmem:[%s13 + $0xc8] sm:$0xff]
  %v938 = vld [vmem:[%s13 + $0xd0] sm:$0xff]
  %v939 = vld [vmem:[%s13 + $0xd8] sm:$0xff]
  %v940 = vld [vmem:[%s13 + $0xe0] sm:$0xff]
  %v941 = vld [vmem:[%s13 + $0xe8] sm:$0xff]
  %v942 = vld [vmem:[%s13 + $0xf0] sm:$0xff]
  %v943 = vld [vmem:[%s13 + $0xf8] sm:$0xff]
  %v944 = vld [vmem:[%s13 + $0x100] sm:$0xff]
  %v945 = vld [vmem:[%s13 + $0x108] sm:$0xff]
  %v946 = vld [vmem:[%s13 + $0x110] sm:$0xff]
  %v947 = vld [vmem:[%s13 + $0x118] sm:$0xff]
  %v948 = vld [vmem:[%s13 + $0x120] sm:$0xff]
  %v949 = vld [vmem:[%s13 + $0x128] sm:$0xff]
  %v950 = vld [vmem:[%s13 + $0x130] sm:$0xff]
  %v951 = vld [vmem:[%s13 + $0x138] sm:$0xff]
  %v952 = vld [vmem:[%s13 + $0x140] sm:$0xff]
  %v953 = vld [vmem:[%s13 + $0x148] sm:$0xff]
  %v954 = vld [vmem:[%s13 + $0x150] sm:$0xff]
  %v955 = vld [vmem:[%s13 + $0x158] sm:$0xff]
  %v956 = vld [vmem:[%s13 + $0x160] sm:$0xff]
  %v957 = vld [vmem:[%s13 + $0x168] sm:$0xff]
  %v958 = vld [vmem:[%s13 + $0x170] sm:$0xff]
  %v959 = vld [vmem:[%s13 + $0x178] sm:$0xff]
  %v960 = vld [vmem:[%s15] sm:$0x7]
  %v962 = vlaneseq
  %v963 = vshrl.u32 %v962, 7
  %v964 = vsub.s32 0, %v963
  %v965 = vrot.slane %v960, %v964
  %v966 = vlaneseq
  %v967 = vshrl.u32 %v966, 7
  %v968 = vsub.s32 1, %v967
  %v969 = vrot.slane %v960, %v968
  %v970 = vlaneseq
  %v971 = vshrl.u32 %v970, 7
  %v972 = vsub.s32 2, %v971
  %v973 = vrot.slane %v960, %v972
  %977 = vmatprep.subr.mxu0 %v913
  %978 = vmatpush1.msra.mxu0 %v912
  %979 = vmatprep.subr.mxu0 %v916
  %980 = vmatpush1.msra.mxu0 %v915
  %981 = vmatprep.subr.mxu0 %v919
  %982 = vmatpush1.msra.mxu0 %v918
  %983 = vmatprep.subr.mxu0 %v922
  %984 = vmatpush1.msra.mxu0 %v921
  %985 = vmatprep.subr.mxu0 %v925
  %986 = vmatpush1.msra.mxu0 %v924
  %987 = vmatprep.subr.mxu0 %v928
  %988 = vmatpush1.msra.mxu0 %v927
  %989 = vmatprep.subr.mxu0 %v931
  %990 = vmatpush1.msra.mxu0 %v930
  %991 = vmatprep.subr.mxu0 %v934
  %992 = vmatpush1.msra.mxu0 %v933
  %993 = vmatprep.subr.mxu0 %v937
  %994 = vmatpush1.msra.mxu0 %v936
  %995 = vmatprep.subr.mxu0 %v940
  %996 = vmatpush1.msra.mxu0 %v939
  %997 = vmatprep.subr.mxu0 %v943
  %998 = vmatpush1.msra.mxu0 %v942
  %999 = vmatprep.subr.mxu0 %v946
  %1000 = vmatpush1.msra.mxu0 %v945
  %1001 = vmatprep.subr.mxu0 %v949
  %1002 = vmatpush1.msra.mxu0 %v948
  %1003 = vmatprep.subr.mxu0 %v952
  %1004 = vmatpush1.msra.mxu0 %v951
  %1005 = vmatprep.subr.mxu0 %v955
  %1006 = vmatpush1.msra.mxu0 %v954
  %1007 = vmatprep.subr.mxu0 %v958
  %1008 = vmatpush1.msra.mxu0 %v957
  %1009 = vmatprep.subr.mxu0 0.0
  %1010 = vmatpush1.msra.mxu0 0.0
  %1011 = vmatprep.subr.mxu0 0.0
  %1012 = vmatpush1.msra.mxu0 0.0
  %1013 = vmatprep.subr.mxu0 0.0
  %1014 = vmatpush1.msra.mxu0 0.0
  %1015 = vmatprep.subr.mxu0 0.0
  %1016 = vmatpush1.msra.mxu0 0.0
  %1017 = vmatprep.subr.mxu0 0.0
  %1018 = vmatpush1.msra.mxu0 0.0
  %1019 = vmatprep.subr.mxu0 0.0
  %1020 = vmatpush1.msra.mxu0 0.0
  %1021 = vmatprep.subr.mxu0 0.0
  %1022 = vmatpush1.msra.mxu0 0.0
  %1023 = vmatprep.subr.mxu0 0.0
  %1024 = vmatpush1.msra.mxu0 0.0
  %1025 = vmatprep.subr.mxu0 0.0
  %1026 = vmatpush1.msra.mxu0 0.0
  %1027 = vmatprep.subr.mxu0 0.0
  %1028 = vmatpush1.msra.mxu0 0.0
  %1029 = vmatprep.subr.mxu0 0.0
  %1030 = vmatpush1.msra.mxu0 0.0
  %1031 = vmatprep.subr.mxu0 0.0
  %1032 = vmatpush1.msra.mxu0 0.0
  %1033 = vmatprep.subr.mxu0 0.0
  %1034 = vmatpush1.msra.mxu0 0.0
  %1035 = vmatprep.subr.mxu0 0.0
  %1036 = vmatpush1.msra.mxu0 0.0
  %1037 = vmatprep.subr.mxu0 0.0
  %1038 = vmatpush1.msra.mxu0 0.0
  %1039 = vmatprep.subr.mxu0 0.0
  %1040 = vmatpush1.msra.mxu0 0.0
  %1041 = vmatprep.mubr.f32.mxu0 0.0
  %1042 = vmatmul.mubr.f32.gmra.mrb[0].mxu0 %v705
  %v1043 = vpop.f32.mrb[0].mxu0
  %v1044 = vadd.f32 %v965, %v1043
  %v1045 = vpop.f32.mrb[0].mxu0
  %v1046 = vadd.f32 %v969, %v1045
  %1047 = vdwg.mxu0
  %1048 = vmatprep.subr.mxu0 0.0
  %1049 = vmatpush1.msra.mxu0 %v914
  %1050 = vmatprep.subr.mxu0 0.0
  %1051 = vmatpush1.msra.mxu0 %v917
  %1052 = vmatprep.subr.mxu0 0.0
  %1053 = vmatpush1.msra.mxu0 %v920
  %1054 = vmatprep.subr.mxu0 0.0
  %1055 = vmatpush1.msra.mxu0 %v923
  %1056 = vmatprep.subr.mxu0 0.0
  %1057 = vmatpush1.msra.mxu0 %v926
  %1058 = vmatprep.subr.mxu0 0.0
  %1059 = vmatpush1.msra.mxu0 %v929
  %1060 = vmatprep.subr.mxu0 0.0
  %1061 = vmatpush1.msra.mxu0 %v932
  %1062 = vmatprep.subr.mxu0 0.0
  %1063 = vmatpush1.msra.mxu0 %v935
  %1064 = vmatprep.subr.mxu0 0.0
  %1065 = vmatpush1.msra.mxu0 %v938
  %1066 = vmatprep.subr.mxu0 0.0
  %1067 = vmatpush1.msra.mxu0 %v941
  %1068 = vmatprep.subr.mxu0 0.0
  %1069 = vmatpush1.msra.mxu0 %v944
  %1070 = vmatprep.subr.mxu0 0.0
  %1071 = vmatpush1.msra.mxu0 %v947
  %1072 = vmatprep.subr.mxu0 0.0
  %1073 = vmatpush1.msra.mxu0 %v950
  %1074 = vmatprep.subr.mxu0 0.0
  %1075 = vmatpush1.msra.mxu0 %v953
  %1076 = vmatprep.subr.mxu0 0.0
  %1077 = vmatpush1.msra.mxu0 %v956
  %1078 = vmatprep.subr.mxu0 0.0
  %1079 = vmatpush1.msra.mxu0 %v959
  %1080 = vmatprep.subr.mxu0 0.0
  %1081 = vmatpush1.msra.mxu0 0.0
  %1082 = vmatprep.subr.mxu0 0.0
  %1083 = vmatpush1.msra.mxu0 0.0
  %1084 = vmatprep.subr.mxu0 0.0
  %1085 = vmatpush1.msra.mxu0 0.0
  %1086 = vmatprep.subr.mxu0 0.0
  %1087 = vmatpush1.msra.mxu0 0.0
  %1088 = vmatprep.subr.mxu0 0.0
  %1089 = vmatpush1.msra.mxu0 0.0
  %1090 = vmatprep.subr.mxu0 0.0
  %1091 = vmatpush1.msra.mxu0 0.0
  %1092 = vmatprep.subr.mxu0 0.0
  %1093 = vmatpush1.msra.mxu0 0.0
  %1094 = vmatprep.subr.mxu0 0.0
  %1095 = vmatpush1.msra.mxu0 0.0
  %1096 = vmatprep.subr.mxu0 0.0
  %1097 = vmatpush1.msra.mxu0 0.0
  %1098 = vmatprep.subr.mxu0 0.0
  %1099 = vmatpush1.msra.mxu0 0.0
  %1100 = vmatprep.subr.mxu0 0.0
  %1101 = vmatpush1.msra.mxu0 0.0
  %1102 = vmatprep.subr.mxu0 0.0
  %1103 = vmatpush1.msra.mxu0 0.0
  %1104 = vmatprep.subr.mxu0 0.0
  %1105 = vmatpush1.msra.mxu0 0.0
  %1106 = vmatprep.subr.mxu0 0.0
  %1107 = vmatpush1.msra.mxu0 0.0
  %1108 = vmatprep.subr.mxu0 0.0
  %1109 = vmatpush1.msra.mxu0 0.0
  %1110 = vmatprep.subr.mxu0 0.0
  %1111 = vmatpush1.msra.mxu0 0.0
  %1112 = vmatprep.mubr.f32.mxu0 0.0
  %1113 = vmatmul.mubr.f32.gmra.mrb[0].mxu0 %v705
  %v1114 = vpop.f32.mrb[0].mxu0
  %v1115 = vadd.f32 %v973, %v1114
  %v1116 = vpop.f32.mrb[0].mxu0
  %1117 = vdwg.mxu0
  %v1118 = vadd.f32 %v838, %v1044
  %v1119 = vxor.u32 %v1118, 2147483648
  %v1120 = vmul.f32 %v1119, 1.442695
  %v1121 = vpow.pop %v1120
  %v1122 = vadd.f32 %v1121, 1.0
  %v1123 = vrcp.pop %v1122
  %v1124 = vmul.f32 1.0, %v1123
  %v1125 = vadd.f32 %v840, %v1046
  %v1126 = vxor.u32 %v1125, 2147483648
  %v1127 = vmul.f32 %v1126, 1.442695
  %v1128 = vpow.pop %v1127
  %v1129 = vadd.f32 %v1128, 1.0
  %v1130 = vrcp.pop %v1129
  %v1131 = vmul.f32 1.0, %v1130
  %v1132 = vmul.f32 %v1124, %v1115
  %v1133 = vadd.f32 %v909, %v1132
  %v1134 = vtanh.pop %v1133
  %v1135 = vsub.f32 1.0, %v1131
  %v1136 = vmul.f32 %v1135, %v1134
  %v1137 = vmul.f32 %v1131, %v705
  %v1138 = vadd.f32 %v1136, %v1137
  %v1139 = vld [vmem:[%s3 + $0x8] sm:$0xff]
  %v1140 = vld [vmem:[%s16] sm:$0xff]
  %v1141 = vld [vmem:[%s16 + $0x8] sm:$0xff]
  %v1142 = vld [vmem:[%s16 + $0x10] sm:$0xff]
  %v1143 = vld [vmem:[%s16 + $0x18] sm:$0xff]
  %v1144 = vld [vmem:[%s16 + $0x20] sm:$0xff]
  %v1145 = vld [vmem:[%s16 + $0x28] sm:$0xff]
  %v1146 = vld [vmem:[%s16 + $0x30] sm:$0xff]
  %v1147 = vld [vmem:[%s16 + $0x38] sm:$0xff]
  %v1148 = vld [vmem:[%s16 + $0x40] sm:$0xff]
  %v1149 = vld [vmem:[%s16 + $0x48] sm:$0xff]
  %v1150 = vld [vmem:[%s16 + $0x50] sm:$0xff]
  %v1151 = vld [vmem:[%s16 + $0x58] sm:$0xff]
  %v1152 = vld [vmem:[%s16 + $0x60] sm:$0xff]
  %v1153 = vld [vmem:[%s16 + $0x68] sm:$0xff]
  %v1154 = vld [vmem:[%s16 + $0x70] sm:$0xff]
  %v1155 = vld [vmem:[%s16 + $0x78] sm:$0xff]
  %v1156 = vld [vmem:[%s16 + $0x80] sm:$0xff]
  %v1157 = vld [vmem:[%s16 + $0x88] sm:$0xff]
  %v1158 = vld [vmem:[%s16 + $0x90] sm:$0xff]
  %v1159 = vld [vmem:[%s16 + $0x98] sm:$0xff]
  %v1160 = vld [vmem:[%s16 + $0xa0] sm:$0xff]
  %v1161 = vld [vmem:[%s16 + $0xa8] sm:$0xff]
  %v1162 = vld [vmem:[%s16 + $0xb0] sm:$0xff]
  %v1163 = vld [vmem:[%s16 + $0xb8] sm:$0xff]
  %v1164 = vld [vmem:[%s16 + $0xc0] sm:$0xff]
  %v1165 = vld [vmem:[%s16 + $0xc8] sm:$0xff]
  %v1166 = vld [vmem:[%s16 + $0xd0] sm:$0xff]
  %v1167 = vld [vmem:[%s16 + $0xd8] sm:$0xff]
  %v1168 = vld [vmem:[%s16 + $0xe0] sm:$0xff]
  %v1169 = vld [vmem:[%s16 + $0xe8] sm:$0xff]
  %v1170 = vld [vmem:[%s16 + $0xf0] sm:$0xff]
  %v1171 = vld [vmem:[%s16 + $0xf8] sm:$0xff]
  %v1172 = vld [vmem:[%s16 + $0x100] sm:$0xff]
  %v1173 = vld [vmem:[%s16 + $0x108] sm:$0xff]
  %v1174 = vld [vmem:[%s16 + $0x110] sm:$0xff]
  %v1175 = vld [vmem:[%s16 + $0x118] sm:$0xff]
  %v1176 = vld [vmem:[%s16 + $0x120] sm:$0xff]
  %v1177 = vld [vmem:[%s16 + $0x128] sm:$0xff]
  %v1178 = vld [vmem:[%s16 + $0x130] sm:$0xff]
  %v1179 = vld [vmem:[%s16 + $0x138] sm:$0xff]
  %v1180 = vld [vmem:[%s16 + $0x140] sm:$0xff]
  %v1181 = vld [vmem:[%s16 + $0x148] sm:$0xff]
  %v1182 = vld [vmem:[%s16 + $0x150] sm:$0xff]
  %v1183 = vld [vmem:[%s16 + $0x158] sm:$0xff]
  %v1184 = vld [vmem:[%s16 + $0x160] sm:$0xff]
  %v1185 = vld [vmem:[%s16 + $0x168] sm:$0xff]
  %v1186 = vld [vmem:[%s16 + $0x170] sm:$0xff]
  %v1187 = vld [vmem:[%s16 + $0x178] sm:$0xff]
  %v1188 = vld [vmem:[%s18] sm:$0x7]
  %v1190 = vlaneseq
  %v1191 = vshrl.u32 %v1190, 7
  %v1192 = vsub.s32 0, %v1191
  %v1193 = vrot.slane %v1188, %v1192
  %v1194 = vlaneseq
  %v1195 = vshrl.u32 %v1194, 7
  %v1196 = vsub.s32 1, %v1195
  %v1197 = vrot.slane %v1188, %v1196
  %v1198 = vlaneseq
  %v1199 = vshrl.u32 %v1198, 7
  %v1200 = vsub.s32 2, %v1199
  %v1201 = vrot.slane %v1188, %v1200
  %1205 = vmatprep.subr.mxu0 %v1141
  %1206 = vmatpush1.msra.mxu0 %v1140
  %1207 = vmatprep.subr.mxu0 %v1144
  %1208 = vmatpush1.msra.mxu0 %v1143
  %1209 = vmatprep.subr.mxu0 %v1147
  %1210 = vmatpush1.msra.mxu0 %v1146
  %1211 = vmatprep.subr.mxu0 %v1150
  %1212 = vmatpush1.msra.mxu0 %v1149
  %1213 = vmatprep.subr.mxu0 %v1153
  %1214 = vmatpush1.msra.mxu0 %v1152
  %1215 = vmatprep.subr.mxu0 %v1156
  %1216 = vmatpush1.msra.mxu0 %v1155
  %1217 = vmatprep.subr.mxu0 %v1159
  %1218 = vmatpush1.msra.mxu0 %v1158
  %1219 = vmatprep.subr.mxu0 %v1162
  %1220 = vmatpush1.msra.mxu0 %v1161
  %1221 = vmatprep.subr.mxu0 %v1165
  %1222 = vmatpush1.msra.mxu0 %v1164
  %1223 = vmatprep.subr.mxu0 %v1168
  %1224 = vmatpush1.msra.mxu0 %v1167
  %1225 = vmatprep.subr.mxu0 %v1171
  %1226 = vmatpush1.msra.mxu0 %v1170
  %1227 = vmatprep.subr.mxu0 %v1174
  %1228 = vmatpush1.msra.mxu0 %v1173
  %1229 = vmatprep.subr.mxu0 %v1177
  %1230 = vmatpush1.msra.mxu0 %v1176
  %1231 = vmatprep.subr.mxu0 %v1180
  %1232 = vmatpush1.msra.mxu0 %v1179
  %1233 = vmatprep.subr.mxu0 %v1183
  %1234 = vmatpush1.msra.mxu0 %v1182
  %1235 = vmatprep.subr.mxu0 %v1186
  %1236 = vmatpush1.msra.mxu0 %v1185
  %1237 = vmatprep.subr.mxu0 0.0
  %1238 = vmatpush1.msra.mxu0 0.0
  %1239 = vmatprep.subr.mxu0 0.0
  %1240 = vmatpush1.msra.mxu0 0.0
  %1241 = vmatprep.subr.mxu0 0.0
  %1242 = vmatpush1.msra.mxu0 0.0
  %1243 = vmatprep.subr.mxu0 0.0
  %1244 = vmatpush1.msra.mxu0 0.0
  %1245 = vmatprep.subr.mxu0 0.0
  %1246 = vmatpush1.msra.mxu0 0.0
  %1247 = vmatprep.subr.mxu0 0.0
  %1248 = vmatpush1.msra.mxu0 0.0
  %1249 = vmatprep.subr.mxu0 0.0
  %1250 = vmatpush1.msra.mxu0 0.0
  %1251 = vmatprep.subr.mxu0 0.0
  %1252 = vmatpush1.msra.mxu0 0.0
  %1253 = vmatprep.subr.mxu0 0.0
  %1254 = vmatpush1.msra.mxu0 0.0
  %1255 = vmatprep.subr.mxu0 0.0
  %1256 = vmatpush1.msra.mxu0 0.0
  %1257 = vmatprep.subr.mxu0 0.0
  %1258 = vmatpush1.msra.mxu0 0.0
  %1259 = vmatprep.subr.mxu0 0.0
  %1260 = vmatpush1.msra.mxu0 0.0
  %1261 = vmatprep.subr.mxu0 0.0
  %1262 = vmatpush1.msra.mxu0 0.0
  %1263 = vmatprep.subr.mxu0 0.0
  %1264 = vmatpush1.msra.mxu0 0.0
  %1265 = vmatprep.subr.mxu0 0.0
  %1266 = vmatpush1.msra.mxu0 0.0
  %1267 = vmatprep.subr.mxu0 0.0
  %1268 = vmatpush1.msra.mxu0 0.0
  %1269 = vmatprep.mubr.f32.mxu0 0.0
  %1270 = vmatmul.mubr.f32.gmra.mrb[0].mxu0 %v1138
  %v1271 = vpop.f32.mrb[0].mxu0
  %v1272 = vadd.f32 %v1193, %v1271
  %v1273 = vpop.f32.mrb[0].mxu0
  %v1274 = vadd.f32 %v1197, %v1273
  %1275 = vdwg.mxu0
  %1276 = vmatprep.subr.mxu0 0.0
  %1277 = vmatpush1.msra.mxu0 %v1142
  %1278 = vmatprep.subr.mxu0 0.0
  %1279 = vmatpush1.msra.mxu0 %v1145
  %1280 = vmatprep.subr.mxu0 0.0
  %1281 = vmatpush1.msra.mxu0 %v1148
  %1282 = vmatprep.subr.mxu0 0.0
  %1283 = vmatpush1.msra.mxu0 %v1151
  %1284 = vmatprep.subr.mxu0 0.0
  %1285 = vmatpush1.msra.mxu0 %v1154
  %1286 = vmatprep.subr.mxu0 0.0
  %1287 = vmatpush1.msra.mxu0 %v1157
  %1288 = vmatprep.subr.mxu0 0.0
  %1289 = vmatpush1.msra.mxu0 %v1160
  %1290 = vmatprep.subr.mxu0 0.0
  %1291 = vmatpush1.msra.mxu0 %v1163
  %1292 = vmatprep.subr.mxu0 0.0
  %1293 = vmatpush1.msra.mxu0 %v1166
  %1294 = vmatprep.subr.mxu0 0.0
  %1295 = vmatpush1.msra.mxu0 %v1169
  %1296 = vmatprep.subr.mxu0 0.0
  %1297 = vmatpush1.msra.mxu0 %v1172
  %1298 = vmatprep.subr.mxu0 0.0
  %1299 = vmatpush1.msra.mxu0 %v1175
  %1300 = vmatprep.subr.mxu0 0.0
  %1301 = vmatpush1.msra.mxu0 %v1178
  %1302 = vmatprep.subr.mxu0 0.0
  %1303 = vmatpush1.msra.mxu0 %v1181
  %1304 = vmatprep.subr.mxu0 0.0
  %1305 = vmatpush1.msra.mxu0 %v1184
  %1306 = vmatprep.subr.mxu0 0.0
  %1307 = vmatpush1.msra.mxu0 %v1187
  %1308 = vmatprep.subr.mxu0 0.0
  %1309 = vmatpush1.msra.mxu0 0.0
  %1310 = vmatprep.subr.mxu0 0.0
  %1311 = vmatpush1.msra.mxu0 0.0
  %1312 = vmatprep.subr.mxu0 0.0
  %1313 = vmatpush1.msra.mxu0 0.0
  %1314 = vmatprep.subr.mxu0 0.0
  %1315 = vmatpush1.msra.mxu0 0.0
  %1316 = vmatprep.subr.mxu0 0.0
  %1317 = vmatpush1.msra.mxu0 0.0
  %1318 = vmatprep.subr.mxu0 0.0
  %1319 = vmatpush1.msra.mxu0 0.0
  %1320 = vmatprep.subr.mxu0 0.0
  %1321 = vmatpush1.msra.mxu0 0.0
  %1322 = vmatprep.subr.mxu0 0.0
  %1323 = vmatpush1.msra.mxu0 0.0
  %1324 = vmatprep.subr.mxu0 0.0
  %1325 = vmatpush1.msra.mxu0 0.0
  %1326 = vmatprep.subr.mxu0 0.0
  %1327 = vmatpush1.msra.mxu0 0.0
  %1328 = vmatprep.subr.mxu0 0.0
  %1329 = vmatpush1.msra.mxu0 0.0
  %1330 = vmatprep.subr.mxu0 0.0
  %1331 = vmatpush1.msra.mxu0 0.0
  %1332 = vmatprep.subr.mxu0 0.0
  %1333 = vmatpush1.msra.mxu0 0.0
  %1334 = vmatprep.subr.mxu0 0.0
  %1335 = vmatpush1.msra.mxu0 0.0
  %1336 = vmatprep.subr.mxu0 0.0
  %1337 = vmatpush1.msra.mxu0 0.0
  %1338 = vmatprep.subr.mxu0 0.0
  %1339 = vmatpush1.msra.mxu0 0.0
  %1340 = vmatprep.mubr.f32.mxu0 0.0
  %1341 = vmatmul.mubr.f32.gmra.mrb[0].mxu0 %v1138
  %v1342 = vpop.f32.mrb[0].mxu0
  %v1343 = vadd.f32 %v1201, %v1342
  %v1344 = vpop.f32.mrb[0].mxu0
  %1345 = vdwg.mxu0
  %v1346 = vld [vmem:[%s17] sm:$0xff]
  %v1347 = vld [vmem:[%s17 + $0x8] sm:$0xff]
  %v1348 = vld [vmem:[%s17 + $0x10] sm:$0xff]
  %v1349 = vld [vmem:[%s17 + $0x18] sm:$0xff]
  %v1350 = vld [vmem:[%s17 + $0x20] sm:$0xff]
  %v1351 = vld [vmem:[%s17 + $0x28] sm:$0xff]
  %v1352 = vld [vmem:[%s17 + $0x30] sm:$0xff]
  %v1353 = vld [vmem:[%s17 + $0x38] sm:$0xff]
  %v1354 = vld [vmem:[%s17 + $0x40] sm:$0xff]
  %v1355 = vld [vmem:[%s17 + $0x48] sm:$0xff]
  %v1356 = vld [vmem:[%s17 + $0x50] sm:$0xff]
  %v1357 = vld [vmem:[%s17 + $0x58] sm:$0xff]
  %v1358 = vld [vmem:[%s17 + $0x60] sm:$0xff]
  %v1359 = vld [vmem:[%s17 + $0x68] sm:$0xff]
  %v1360 = vld [vmem:[%s17 + $0x70] sm:$0xff]
  %v1361 = vld [vmem:[%s17 + $0x78] sm:$0xff]
  %v1362 = vld [vmem:[%s17 + $0x80] sm:$0xff]
  %v1363 = vld [vmem:[%s17 + $0x88] sm:$0xff]
  %v1364 = vld [vmem:[%s17 + $0x90] sm:$0xff]
  %v1365 = vld [vmem:[%s17 + $0x98] sm:$0xff]
  %v1366 = vld [vmem:[%s17 + $0xa0] sm:$0xff]
  %v1367 = vld [vmem:[%s17 + $0xa8] sm:$0xff]
  %v1368 = vld [vmem:[%s17 + $0xb0] sm:$0xff]
  %v1369 = vld [vmem:[%s17 + $0xb8] sm:$0xff]
  %v1370 = vld [vmem:[%s17 + $0xc0] sm:$0xff]
  %v1371 = vld [vmem:[%s17 + $0xc8] sm:$0xff]
  %v1372 = vld [vmem:[%s17 + $0xd0] sm:$0xff]
  %v1373 = vld [vmem:[%s17 + $0xd8] sm:$0xff]
  %v1374 = vld [vmem:[%s17 + $0xe0] sm:$0xff]
  %v1375 = vld [vmem:[%s17 + $0xe8] sm:$0xff]
  %v1376 = vld [vmem:[%s17 + $0xf0] sm:$0xff]
  %v1377 = vld [vmem:[%s17 + $0xf8] sm:$0xff]
  %v1378 = vld [vmem:[%s17 + $0x100] sm:$0xff]
  %v1379 = vld [vmem:[%s17 + $0x108] sm:$0xff]
  %v1380 = vld [vmem:[%s17 + $0x110] sm:$0xff]
  %v1381 = vld [vmem:[%s17 + $0x118] sm:$0xff]
  %v1382 = vld [vmem:[%s17 + $0x120] sm:$0xff]
  %v1383 = vld [vmem:[%s17 + $0x128] sm:$0xff]
  %v1384 = vld [vmem:[%s17 + $0x130] sm:$0xff]
  %v1385 = vld [vmem:[%s17 + $0x138] sm:$0xff]
  %v1386 = vld [vmem:[%s17 + $0x140] sm:$0xff]
  %v1387 = vld [vmem:[%s17 + $0x148] sm:$0xff]
  %v1388 = vld [vmem:[%s17 + $0x150] sm:$0xff]
  %v1389 = vld [vmem:[%s17 + $0x158] sm:$0xff]
  %v1390 = vld [vmem:[%s17 + $0x160] sm:$0xff]
  %v1391 = vld [vmem:[%s17 + $0x168] sm:$0xff]
  %v1392 = vld [vmem:[%s17 + $0x170] sm:$0xff]
  %v1393 = vld [vmem:[%s17 + $0x178] sm:$0xff]
  %v1394 = vld [vmem:[%s19] sm:$0x7]
  %v1396 = vlaneseq
  %v1397 = vshrl.u32 %v1396, 7
  %v1398 = vsub.s32 0, %v1397
  %v1399 = vrot.slane %v1394, %v1398
  %v1400 = vlaneseq
  %v1401 = vshrl.u32 %v1400, 7
  %v1402 = vsub.s32 1, %v1401
  %v1403 = vrot.slane %v1394, %v1402
  %v1404 = vlaneseq
  %v1405 = vshrl.u32 %v1404, 7
  %v1406 = vsub.s32 2, %v1405
  %v1407 = vrot.slane %v1394, %v1406
  %1411 = vmatprep.subr.mxu0 %v1347
  %1412 = vmatpush1.msra.mxu0 %v1346
  %1413 = vmatprep.subr.mxu0 %v1350
  %1414 = vmatpush1.msra.mxu0 %v1349
  %1415 = vmatprep.subr.mxu0 %v1353
  %1416 = vmatpush1.msra.mxu0 %v1352
  %1417 = vmatprep.subr.mxu0 %v1356
  %1418 = vmatpush1.msra.mxu0 %v1355
  %1419 = vmatprep.subr.mxu0 %v1359
  %1420 = vmatpush1.msra.mxu0 %v1358
  %1421 = vmatprep.subr.mxu0 %v1362
  %1422 = vmatpush1.msra.mxu0 %v1361
  %1423 = vmatprep.subr.mxu0 %v1365
  %1424 = vmatpush1.msra.mxu0 %v1364
  %1425 = vmatprep.subr.mxu0 %v1368
  %1426 = vmatpush1.msra.mxu0 %v1367
  %1427 = vmatprep.subr.mxu0 %v1371
  %1428 = vmatpush1.msra.mxu0 %v1370
  %1429 = vmatprep.subr.mxu0 %v1374
  %1430 = vmatpush1.msra.mxu0 %v1373
  %1431 = vmatprep.subr.mxu0 %v1377
  %1432 = vmatpush1.msra.mxu0 %v1376
  %1433 = vmatprep.subr.mxu0 %v1380
  %1434 = vmatpush1.msra.mxu0 %v1379
  %1435 = vmatprep.subr.mxu0 %v1383
  %1436 = vmatpush1.msra.mxu0 %v1382
  %1437 = vmatprep.subr.mxu0 %v1386
  %1438 = vmatpush1.msra.mxu0 %v1385
  %1439 = vmatprep.subr.mxu0 %v1389
  %1440 = vmatpush1.msra.mxu0 %v1388
  %1441 = vmatprep.subr.mxu0 %v1392
  %1442 = vmatpush1.msra.mxu0 %v1391
  %1443 = vmatprep.subr.mxu0 0.0
  %1444 = vmatpush1.msra.mxu0 0.0
  %1445 = vmatprep.subr.mxu0 0.0
  %1446 = vmatpush1.msra.mxu0 0.0
  %1447 = vmatprep.subr.mxu0 0.0
  %1448 = vmatpush1.msra.mxu0 0.0
  %1449 = vmatprep.subr.mxu0 0.0
  %1450 = vmatpush1.msra.mxu0 0.0
  %1451 = vmatprep.subr.mxu0 0.0
  %1452 = vmatpush1.msra.mxu0 0.0
  %1453 = vmatprep.subr.mxu0 0.0
  %1454 = vmatpush1.msra.mxu0 0.0
  %1455 = vmatprep.subr.mxu0 0.0
  %1456 = vmatpush1.msra.mxu0 0.0
  %1457 = vmatprep.subr.mxu0 0.0
  %1458 = vmatpush1.msra.mxu0 0.0
  %1459 = vmatprep.subr.mxu0 0.0
  %1460 = vmatpush1.msra.mxu0 0.0
  %1461 = vmatprep.subr.mxu0 0.0
  %1462 = vmatpush1.msra.mxu0 0.0
  %1463 = vmatprep.subr.mxu0 0.0
  %1464 = vmatpush1.msra.mxu0 0.0
  %1465 = vmatprep.subr.mxu0 0.0
  %1466 = vmatpush1.msra.mxu0 0.0
  %1467 = vmatprep.subr.mxu0 0.0
  %1468 = vmatpush1.msra.mxu0 0.0
  %1469 = vmatprep.subr.mxu0 0.0
  %1470 = vmatpush1.msra.mxu0 0.0
  %1471 = vmatprep.subr.mxu0 0.0
  %1472 = vmatpush1.msra.mxu0 0.0
  %1473 = vmatprep.subr.mxu0 0.0
  %1474 = vmatpush1.msra.mxu0 0.0
  %1475 = vmatprep.mubr.f32.mxu0 0.0
  %1476 = vmatmul.mubr.f32.gmra.mrb[0].mxu0 %v1139
  %v1477 = vpop.f32.mrb[0].mxu0
  %v1478 = vadd.f32 %v1399, %v1477
  %v1479 = vpop.f32.mrb[0].mxu0
  %v1480 = vadd.f32 %v1403, %v1479
  %1481 = vdwg.mxu0
  %1482 = vmatprep.subr.mxu0 0.0
  %1483 = vmatpush1.msra.mxu0 %v1348
  %1484 = vmatprep.subr.mxu0 0.0
  %1485 = vmatpush1.msra.mxu0 %v1351
  %1486 = vmatprep.subr.mxu0 0.0
  %1487 = vmatpush1.msra.mxu0 %v1354
  %1488 = vmatprep.subr.mxu0 0.0
  %1489 = vmatpush1.msra.mxu0 %v1357
  %1490 = vmatprep.subr.mxu0 0.0
  %1491 = vmatpush1.msra.mxu0 %v1360
  %1492 = vmatprep.subr.mxu0 0.0
  %1493 = vmatpush1.msra.mxu0 %v1363
  %1494 = vmatprep.subr.mxu0 0.0
  %1495 = vmatpush1.msra.mxu0 %v1366
  %1496 = vmatprep.subr.mxu0 0.0
  %1497 = vmatpush1.msra.mxu0 %v1369
  %1498 = vmatprep.subr.mxu0 0.0
  %1499 = vmatpush1.msra.mxu0 %v1372
  %1500 = vmatprep.subr.mxu0 0.0
  %1501 = vmatpush1.msra.mxu0 %v1375
  %1502 = vmatprep.subr.mxu0 0.0
  %1503 = vmatpush1.msra.mxu0 %v1378
  %1504 = vmatprep.subr.mxu0 0.0
  %1505 = vmatpush1.msra.mxu0 %v1381
  %1506 = vmatprep.subr.mxu0 0.0
  %1507 = vmatpush1.msra.mxu0 %v1384
  %1508 = vmatprep.subr.mxu0 0.0
  %1509 = vmatpush1.msra.mxu0 %v1387
  %1510 = vmatprep.subr.mxu0 0.0
  %1511 = vmatpush1.msra.mxu0 %v1390
  %1512 = vmatprep.subr.mxu0 0.0
  %1513 = vmatpush1.msra.mxu0 %v1393
  %1514 = vmatprep.subr.mxu0 0.0
  %1515 = vmatpush1.msra.mxu0 0.0
  %1516 = vmatprep.subr.mxu0 0.0
  %1517 = vmatpush1.msra.mxu0 0.0
  %1518 = vmatprep.subr.mxu0 0.0
  %1519 = vmatpush1.msra.mxu0 0.0
  %1520 = vmatprep.subr.mxu0 0.0
  %1521 = vmatpush1.msra.mxu0 0.0
  %1522 = vmatprep.subr.mxu0 0.0
  %1523 = vmatpush1.msra.mxu0 0.0
  %1524 = vmatprep.subr.mxu0 0.0
  %1525 = vmatpush1.msra.mxu0 0.0
  %1526 = vmatprep.subr.mxu0 0.0
  %1527 = vmatpush1.msra.mxu0 0.0
  %1528 = vmatprep.subr.mxu0 0.0
  %1529 = vmatpush1.msra.mxu0 0.0
  %1530 = vmatprep.subr.mxu0 0.0
  %1531 = vmatpush1.msra.mxu0 0.0
  %1532 = vmatprep.subr.mxu0 0.0
  %1533 = vmatpush1.msra.mxu0 0.0
  %1534 = vmatprep.subr.mxu0 0.0
  %1535 = vmatpush1.msra.mxu0 0.0
  %1536 = vmatprep.subr.mxu0 0.0
  %1537 = vmatpush1.msra.mxu0 0.0
  %1538 = vmatprep.subr.mxu0 0.0
  %1539 = vmatpush1.msra.mxu0 0.0
  %1540 = vmatprep.subr.mxu0 0.0
  %1541 = vmatpush1.msra.mxu0 0.0
  %1542 = vmatprep.subr.mxu0 0.0
  %1543 = vmatpush1.msra.mxu0 0.0
  %1544 = vmatprep.subr.mxu0 0.0
  %1545 = vmatpush1.msra.mxu0 0.0
  %1546 = vmatprep.mubr.f32.mxu0 0.0
  %1547 = vmatmul.mubr.f32.gmra.mrb[0].mxu0 %v1139
  %v1548 = vpop.f32.mrb[0].mxu0
  %v1549 = vadd.f32 %v1407, %v1548
  %v1550 = vpop.f32.mrb[0].mxu0
  %1551 = vdwg.mxu0
  %v1552 = vadd.f32 %v1272, %v1478
  %v1553 = vxor.u32 %v1552, 2147483648
  %v1554 = vmul.f32 %v1553, 1.442695
  %v1555 = vpow.pop %v1554
  %v1556 = vadd.f32 %v1555, 1.0
  %v1557 = vrcp.pop %v1556
  %v1558 = vmul.f32 1.0, %v1557
  %v1559 = vadd.f32 %v1274, %v1480
  %v1560 = vxor.u32 %v1559, 2147483648
  %v1561 = vmul.f32 %v1560, 1.442695
  %v1562 = vpow.pop %v1561
  %v1563 = vadd.f32 %v1562, 1.0
  %v1564 = vrcp.pop %v1563
  %v1565 = vmul.f32 1.0, %v1564
  %v1566 = vmul.f32 %v1558, %v1549
  %v1567 = vadd.f32 %v1343, %v1566
  %v1568 = vtanh.pop %v1567
  %v1569 = vsub.f32 1.0, %v1565
  %v1570 = vmul.f32 %v1569, %v1568
  %v1571 = vmul.f32 %v1565, %v1139
  %v1572 = vadd.f32 %v1570, %v1571
  %1573 = vst [vmem:[%s23] sm:$0xff] %v1138
  %1574 = vst [vmem:[%s23 + $0x8] sm:$0xff] %v1572
  %v1575 = vld [vmem:[%s20] sm:$0xff]
  %v1576 = vld [vmem:[%s20 + $0x8] sm:$0xff]
  %v1577 = vld [vmem:[%s20 + $0x10] sm:$0xff]
  %v1578 = vld [vmem:[%s20 + $0x18] sm:$0xff]
  %v1579 = vld [vmem:[%s20 + $0x20] sm:$0xff]
  %v1580 = vld [vmem:[%s20 + $0x28] sm:$0xff]
  %v1581 = vld [vmem:[%s20 + $0x30] sm:$0xff]
  %v1582 = vld [vmem:[%s20 + $0x38] sm:$0xff]
  %v1583 = vld [vmem:[%s20 + $0x40] sm:$0xff]
  %v1584 = vld [vmem:[%s20 + $0x48] sm:$0xff]
  %v1585 = vld [vmem:[%s20 + $0x50] sm:$0xff]
  %v1586 = vld [vmem:[%s20 + $0x58] sm:$0xff]
  %v1587 = vld [vmem:[%s20 + $0x60] sm:$0xff]
  %v1588 = vld [vmem:[%s20 + $0x68] sm:$0xff]
  %v1589 = vld [vmem:[%s20 + $0x70] sm:$0xff]
  %v1590 = vld [vmem:[%s20 + $0x78] sm:$0xff]
  %v1591 = vld [vmem:[%s21] sm:$0x1]
  %v1593 = vlaneseq
  %v1594 = vshrl.u32 %v1593, 7
  %v1595 = vsub.s32 0, %v1594
  %v1596 = vrot.slane %v1591, %v1595
  %1598 = vmatprep.subr.mxu0 0.0
  %1599 = vmatpush1.msra.mxu0 %v1575
  %1600 = vmatprep.subr.mxu0 0.0
  %1601 = vmatpush1.msra.mxu0 %v1576
  %1602 = vmatprep.subr.mxu0 0.0
  %1603 = vmatpush1.msra.mxu0 %v1577
  %1604 = vmatprep.subr.mxu0 0.0
  %1605 = vmatpush1.msra.mxu0 %v1578
  %1606 = vmatprep.subr.mxu0 0.0
  %1607 = vmatpush1.msra.mxu0 %v1579
  %1608 = vmatprep.subr.mxu0 0.0
  %1609 = vmatpush1.msra.mxu0 %v1580
  %1610 = vmatprep.subr.mxu0 0.0
  %1611 = vmatpush1.msra.mxu0 %v1581
  %1612 = vmatprep.subr.mxu0 0.0
  %1613 = vmatpush1.msra.mxu0 %v1582
  %1614 = vmatprep.subr.mxu0 0.0
  %1615 = vmatpush1.msra.mxu0 %v1583
  %1616 = vmatprep.subr.mxu0 0.0
  %1617 = vmatpush1.msra.mxu0 %v1584
  %1618 = vmatprep.subr.mxu0 0.0
  %1619 = vmatpush1.msra.mxu0 %v1585
  %1620 = vmatprep.subr.mxu0 0.0
  %1621 = vmatpush1.msra.mxu0 %v1586
  %1622 = vmatprep.subr.mxu0 0.0
  %1623 = vmatpush1.msra.mxu0 %v1587
  %1624 = vmatprep.subr.mxu0 0.0
  %1625 = vmatpush1.msra.mxu0 %v1588
  %1626 = vmatprep.subr.mxu0 0.0
  %1627 = vmatpush1.msra.mxu0 %v1589
  %1628 = vmatprep.subr.mxu0 0.0
  %1629 = vmatpush1.msra.mxu0 %v1590
  %1630 = vmatprep.subr.mxu0 0.0
  %1631 = vmatpush1.msra.mxu0 0.0
  %1632 = vmatprep.subr.mxu0 0.0
  %1633 = vmatpush1.msra.mxu0 0.0
  %1634 = vmatprep.subr.mxu0 0.0
  %1635 = vmatpush1.msra.mxu0 0.0
  %1636 = vmatprep.subr.mxu0 0.0
  %1637 = vmatpush1.msra.mxu0 0.0
  %1638 = vmatprep.subr.mxu0 0.0
  %1639 = vmatpush1.msra.mxu0 0.0
  %1640 = vmatprep.subr.mxu0 0.0
  %1641 = vmatpush1.msra.mxu0 0.0
  %1642 = vmatprep.subr.mxu0 0.0
  %1643 = vmatpush1.msra.mxu0 0.0
  %1644 = vmatprep.subr.mxu0 0.0
  %1645 = vmatpush1.msra.mxu0 0.0
  %1646 = vmatprep.subr.mxu0 0.0
  %1647 = vmatpush1.msra.mxu0 0.0
  %1648 = vmatprep.subr.mxu0 0.0
  %1649 = vmatpush1.msra.mxu0 0.0
  %1650 = vmatprep.subr.mxu0 0.0
  %1651 = vmatpush1.msra.mxu0 0.0
  %1652 = vmatprep.subr.mxu0 0.0
  %1653 = vmatpush1.msra.mxu0 0.0
  %1654 = vmatprep.subr.mxu0 0.0
  %1655 = vmatpush1.msra.mxu0 0.0
  %1656 = vmatprep.subr.mxu0 0.0
  %1657 = vmatpush1.msra.mxu0 0.0
  %1658 = vmatprep.subr.mxu0 0.0
  %1659 = vmatpush1.msra.mxu0 0.0
  %1660 = vmatprep.subr.mxu0 0.0
  %1661 = vmatpush1.msra.mxu0 0.0
  %1662 = vmatprep.mubr.f32.mxu0 0.0
  %1663 = vmatmul.mubr.f32.gmra.mrb[0].mxu0 %v1572
  %v1664 = vpop.f32.mrb[0].mxu0
  %v1665 = vadd.f32 %v1596, %v1664
  %v1666 = vpop.f32.mrb[0].mxu0
  %1667 = vdwg.mxu0
  %1668 = vst [vmem:[%s22] sm:$0xff] %v1665
  // Predicated region
  $region90: #{attention_decoder_bahdanau.1} parent=0 // pred_check
    _
  $region91: #{attention_decoder_bahdanau.1} parent=0 // pred_check_branch
    %1670 = sbr.rel (0) target = $region93
  $region92: #{attention_decoder_bahdanau.1} parent=0 // pred_region
    _
  $region93: #{attention_decoder_bahdanau.1} parent=0 // pred_fallthru
    _
  // Predicated region
  $region94: #{attention_decoder_bahdanau.1} parent=0 // pred_check
    _
  $region95: #{attention_decoder_bahdanau.1} parent=0 // pred_check_branch
    %1672 = sbr.rel (0) target = $region97
  $region96: #{attention_decoder_bahdanau.1} parent=0 // pred_region
    _
  $region97: #{attention_decoder_bahdanau.1} parent=0 // pred_fallthru
    _
  // Predicated region
  $region98: #{attention_decoder_bahdanau.1} parent=0 // pred_check
    _
  $region99: #{attention_decoder_bahdanau.1} parent=0 // pred_check_branch
    %1674 = sbr.rel (0) target = $region101
  $region100: #{attention_decoder_bahdanau.1} parent=0 // pred_region
    _
  $region101: #{attention_decoder_bahdanau.1} parent=0 // pred_fallthru
    _
  // Predicated region
  $region102: #{attention_decoder_bahdanau.1} parent=0 // pred_check
    _
  $region103: #{attention_decoder_bahdanau.1} parent=0 // pred_check_branch
    %1676 = sbr.rel (0) target = $region105
  $region104: #{attention_decoder_bahdanau.1} parent=0 // pred_region
    _
  $region105: #{attention_decoder_bahdanau.1} parent=0 // pred_fallthru
    _

</llo_original>
